<compile_context>
chip_gen: v6e
topology: v6e:2x2x1
jax: 0.10.0
libtpu: 0.0.40
codegen_flags: <defaults>
</compile_context>

<pallas_src>
import jax
import jax.numpy as jnp
import numpy as np
from jax.experimental import pallas as pl
from jax.experimental.pallas import tpu as pltpu


def _round_up(x, m):
    return ((x + m - 1) // m) * m


def rnn_pool_kernel(xf_ref, xb_ref, lens_ref, wih_f_ref, wih_b_ref,
                    b_f_ref, b_b_ref, whh_ref, out_ref):
    """One (batch-tile, time-chunk) grid step of the bidirectional RNN recurrence.

    xf_ref : (TC, BT, Ip) bf16   time chunk ti (forward order)
    xb_ref : (TC, BT, Ip) bf16   time chunk nT-1-ti (consumed in reverse inside)
    lens_ref: (BT, 1)     i32    per-row sequence lengths (0 for padded rows)
    wih_*  : (Ip, Hp)     bf16   input->hidden weights, pre-transposed & zero-padded
    b_*    : (1, Hp)      f32    combined bias b_ih + b_hh, zero-padded
    whh_ref: (2Hp, 2Hp)   bf16   block-diagonal [[Whh_f^T, 0], [0, Whh_b^T]]
    out_ref: (BT, 2Hp)    f32    pooled output [h_fwd | h_bwd]; VMEM-resident across time
                                 chunks (accumulator pattern), so it doubles as the carried state.
    """
    TC, BT, Ip = xf_ref.shape
    Hp = wih_f_ref.shape[1]
    ti = pl.program_id(1)
    nT = pl.num_programs(1)

    @pl.when(ti == 0)
    def _init():
        out_ref[...] = jnp.zeros_like(out_ref)

    # --- Hoisted input projection: one bf16 GEMM per direction per chunk (bias folded in). ---
    xf = xf_ref[...].reshape(TC * BT, Ip)
    xb = xb_ref[...].reshape(TC * BT, Ip)
    pf = (jnp.dot(xf, wih_f_ref[...], preferred_element_type=jnp.float32)
          + b_f_ref[...]).reshape(TC, BT, Hp)
    pb = (jnp.dot(xb, wih_b_ref[...], preferred_element_type=jnp.float32)
          + b_b_ref[...]).reshape(TC, BT, Hp)

    lens = lens_ref[...]                  # (BT, 1) int32
    whh = whh_ref[...]                    # (2Hp, 2Hp) bf16 block-diagonal
    t0_f = ti * TC                        # global time of pf[0]
    t0_b = (nT - 1 - ti) * TC             # global time of pb[0]

    # --- Recurrence: one fused fwd+bwd hidden matmul per step, fully unrolled over the chunk. ---
    h = out_ref[...]                      # (BT, 2Hp) f32, [hf | hb]
    for k in range(TC):                   # static trip count -> straight-line code, static slices
        z = jnp.dot(h.astype(jnp.bfloat16), whh,
                    preferred_element_type=jnp.float32)        # (BT, 2Hp)
        nhf = jnp.tanh(z[:, :Hp] + pf[k])
        nhb = jnp.tanh(z[:, Hp:] + pb[TC - 1 - k])
        # Length masking reproduces pack_padded_sequence: padded steps never advance the state.
        hf = jnp.where(t0_f + k < lens, nhf, h[:, :Hp])
        hb = jnp.where(t0_b + (TC - 1 - k) < lens, nhb, h[:, Hp:])
        h = jnp.concatenate([hf, hb], axis=-1)   # lane-aligned halves -> cheap vreg placement
    out_ref[...] = h                      # lane-dense (BT, 2Hp) store; HBM writeback at ti==nT-1


def pooling_rnn_local(inputs, seq_lens, params, *, batch_tile=8, time_chunk=8):
    """inputs: (B, T, I) batch_first, I == 2*hidden_size. Returns (B, 2*H) pooled output (f32)."""
    B, T, I = inputs.shape
    H = params["w_hh_f"].shape[0]
    assert I == 2 * H, "PoolingRNNLocal requires input_size == 2 * hidden_size"
    assert batch_tile % 8 == 0

    Hp = _round_up(H, 128)          # lane-pad hidden size
    Ip = _round_up(I, 128)          # lane-pad input size
    BT = batch_tile                 # sublane-aligned batch tile
    Bp = _round_up(B, BT)
    TC = time_chunk                 # timesteps streamed per grid step
    Tp = _round_up(T, TC)
    nB = Bp // BT
    nT = Tp // TC

    f32 = jnp.float32
    p = {k: jnp.asarray(v, f32) for k, v in params.items()}

    # Time-major, zero-padded, bf16 inputs (zeros in padded rows/lanes are inert).
    x_tm = jnp.transpose(jnp.asarray(inputs, f32), (1, 0, 2))                 # (T, B, I)
    x_pad = jnp.zeros((Tp, Bp, Ip), f32).at[:T, :B, :I].set(x_tm).astype(jnp.bfloat16)
    lens = jnp.zeros((Bp, 1), jnp.int32).at[:B, 0].set(jnp.asarray(seq_lens, jnp.int32))

    # Pre-transposed (x @ W layout), zero-padded weights; matmul operands in bf16.
    wih_f = jnp.zeros((Ip, Hp), f32).at[:I, :H].set(p["w_ih_f"].T).astype(jnp.bfloat16)
    wih_b = jnp.zeros((Ip, Hp), f32).at[:I, :H].set(p["w_ih_b"].T).astype(jnp.bfloat16)
    whh = (jnp.zeros((2 * Hp, 2 * Hp), f32)
           .at[:H, :H].set(p["w_hh_f"].T)
           .at[Hp:Hp + H, Hp:Hp + H].set(p["w_hh_b"].T)
           .astype(jnp.bfloat16))
    b_f = jnp.zeros((1, Hp), f32).at[0, :H].set(p["b_ih_f"] + p["b_hh_f"])
    b_b = jnp.zeros((1, Hp), f32).at[0, :H].set(p["b_ih_b"] + p["b_hh_b"])

    grid_spec = pltpu.PrefetchScalarGridSpec(
        num_scalar_prefetch=0,
        grid=(nB, nT),
        in_specs=[
            pl.BlockSpec((TC, BT, Ip), lambda bi, ti: (ti, bi, 0)),             # x, forward chunks
            pl.BlockSpec((TC, BT, Ip), lambda bi, ti: (nT - 1 - ti, bi, 0)),    # x, reverse chunks
            pl.BlockSpec((BT, 1), lambda bi, ti: (bi, 0)),                      # lens
            pl.BlockSpec((Ip, Hp), lambda bi, ti: (0, 0)),                      # W_ih fwd (resident)
            pl.BlockSpec((Ip, Hp), lambda bi, ti: (0, 0)),                      # W_ih bwd (resident)
            pl.BlockSpec((1, Hp), lambda bi, ti: (0, 0)),                       # bias fwd
            pl.BlockSpec((1, Hp), lambda bi, ti: (0, 0)),                       # bias bwd
            pl.BlockSpec((2 * Hp, 2 * Hp), lambda bi, ti: (0, 0)),              # W_hh block-diag
        ],
        out_specs=pl.BlockSpec((BT, 2 * Hp), lambda bi, ti: (bi, 0)),           # resident over ti
    )

    res = pl.pallas_call(
        rnn_pool_kernel,
        out_shape=jax.ShapeDtypeStruct((Bp, 2 * Hp), jnp.float32),
        grid_spec=grid_spec,
        compiler_params=pltpu.CompilerParams(
            dimension_semantics=("parallel", "arbitrary")),
    )(x_pad, x_pad, lens, wih_f, wih_b, b_f, b_b, whh)

    # Strip padding: pooled = [h_fwd[:, :H] | h_bwd[:, :H]]  (layout plumbing, done by XLA)
    return jnp.concatenate([res[:B, :H], res[:B, Hp:Hp + H]], axis=-1)


def reference_numpy(inputs, seq_lens, params):
    """Pure-numpy re-implementation of the PyTorch forward (packed bidirectional RNN + pooling)."""
    x = np.asarray(inputs, np.float32)
    B, T, I = x.shape
    H = params["w_hh_f"].shape[0]
    p = {k: np.asarray(v, np.float32) for k, v in params.items()}
    out = np.zeros((B, 2 * H), np.float32)
    for b in range(B):
        L = int(seq_lens[b])
        hf = np.zeros(H, np.float32)
        for t in range(L):
            hf = np.tanh(p["w_ih_f"] @ x[b, t] + p["b_ih_f"] + p["w_hh_f"] @ hf + p["b_hh_f"])
        hb = np.zeros(H, np.float32)
        for t in range(L - 1, -1, -1):
            hb = np.tanh(p["w_ih_b"] @ x[b, t] + p["b_ih_b"] + p["w_hh_b"] @ hb + p["b_hh_b"])
        out[b] = np.concatenate([hf, hb])
    return out


if __name__ == "__main__":
    B, T, H = 2, 8, 32
    I = 2 * H  # required so pooled output (2*H) matches inputs.shape[-1]
    seq_lens = [8, 5]

    key = jax.random.PRNGKey(0)
    ks = jax.random.split(key, 9)
    scale = 0.1
    params = {
        "w_ih_f": jax.random.normal(ks[0], (H, I), jnp.float32) * scale,
        "w_hh_f": jax.random.normal(ks[1], (H, H), jnp.float32) * scale,
        "b_ih_f": jax.random.normal(ks[2], (H,), jnp.float32) * scale,
        "b_hh_f": jax.random.normal(ks[3], (H,), jnp.float32) * scale,
        "w_ih_b": jax.random.normal(ks[4], (H, I), jnp.float32) * scale,
        "w_hh_b": jax.random.normal(ks[5], (H, H), jnp.float32) * scale,
        "b_ih_b": jax.random.normal(ks[6], (H,), jnp.float32) * scale,
        "b_hh_b": jax.random.normal(ks[7], (H,), jnp.float32) * scale,
    }
    inputs = jax.random.normal(ks[8], (B, T, I), jnp.float32)

    out = pooling_rnn_local(inputs, seq_lens, params)
    out = jax.block_until_ready(out)

    ref = reference_numpy(inputs, seq_lens, params)
    assert out.shape == (B, I)
    # Tolerance accounts for bf16 matmul operands (f32 accumulate) compounded over T steps.
    np.testing.assert_allclose(np.asarray(out), ref, rtol=3e-2, atol=3e-2)
    print("KERNEL_OK")
</pallas_src>

<mosaic_0001>
module attributes {stable_mosaic.version = 11 : i64} {
  func.func @rnn_pool_kernel(%arg0: i32, %arg1: i32, %arg2: memref<8x8x128xbf16, #tpu.memory_space<vmem>>, %arg3: memref<8x8x128xbf16, #tpu.memory_space<vmem>>, %arg4: memref<8x1xi32, #tpu.memory_space<vmem>>, %arg5: memref<128x128xbf16, #tpu.memory_space<vmem>>, %arg6: memref<128x128xbf16, #tpu.memory_space<vmem>>, %arg7: memref<1x128xf32, #tpu.memory_space<vmem>>, %arg8: memref<1x128xf32, #tpu.memory_space<vmem>>, %arg9: memref<256x256xbf16, #tpu.memory_space<vmem>>, %arg10: memref<8x256xf32, #tpu.memory_space<vmem>>) attributes {dimension_semantics = [#tpu.dimension_semantics<parallel>, #tpu.dimension_semantics<arbitrary>], iteration_bounds = array<i64: 1, 1>, scalar_prefetch = 0 : i64, scratch_operands = 0 : i64, tpu.core_type = #tpu.core_type<tc>, window_params = [{transform_indices = @transform_0, window_bounds = array<i64: 8, 8, 128>}, {transform_indices = @transform_1, window_bounds = array<i64: 8, 8, 128>}, {transform_indices = @transform_2, window_bounds = array<i64: 8, 1>}, {pipeline_mode = #tpu.pipeline_mode<synchronous>, transform_indices = @transform_3, window_bounds = array<i64: 128, 128>}, {pipeline_mode = #tpu.pipeline_mode<synchronous>, transform_indices = @transform_4, window_bounds = array<i64: 128, 128>}, {pipeline_mode = #tpu.pipeline_mode<synchronous>, transform_indices = @transform_5, window_bounds = array<i64: 1, 128>}, {pipeline_mode = #tpu.pipeline_mode<synchronous>, transform_indices = @transform_6, window_bounds = array<i64: 1, 128>}, {pipeline_mode = #tpu.pipeline_mode<synchronous>, transform_indices = @transform_7, window_bounds = array<i64: 256, 256>}, {transform_indices = @transform_8, window_bounds = array<i64: 8, 256>}]} {
    %c0_i32 = arith.constant 0 : i32
    %0 = arith.cmpi eq, %arg1, %c0_i32 : i32
    %1 = arith.extui %0 : i1 to i32
    %c0_i32_0 = arith.constant 0 : i32
    %2 = arith.cmpi ne, %1, %c0_i32_0 : i32
    scf.if %2 {
      %cst_42 = arith.constant 0.000000e+00 : f32
      %242 = vector.broadcast %cst_42 : f32 to vector<8x256xf32>
      %c0_43 = arith.constant 0 : index
      %c0_44 = arith.constant 0 : index
      %243 = vector.load %arg10[%c0_43, %c0_44] : memref<8x256xf32, #tpu.memory_space<vmem>>, vector<8x256xf32>
      tpu.vector_store %arg10[%c0_43, %c0_44], %242 {strides = array<i32>} : memref<8x256xf32, #tpu.memory_space<vmem>>, vector<8x256xf32>,
    } else {
    }
    %c0 = arith.constant 0 : index
    %c0_1 = arith.constant 0 : index
    %c0_2 = arith.constant 0 : index
    %3 = vector.load %arg2[%c0, %c0_1, %c0_2] : memref<8x8x128xbf16, #tpu.memory_space<vmem>>, vector<8x8x128xbf16>
    %4 = vector.shape_cast %3 : vector<8x8x128xbf16> to vector<64x128xbf16>
    %c0_3 = arith.constant 0 : index
    %c0_4 = arith.constant 0 : index
    %c0_5 = arith.constant 0 : index
    %5 = vector.load %arg3[%c0_3, %c0_4, %c0_5] : memref<8x8x128xbf16, #tpu.memory_space<vmem>>, vector<8x8x128xbf16>
    %6 = vector.shape_cast %5 : vector<8x8x128xbf16> to vector<64x128xbf16>
    %c0_6 = arith.constant 0 : index
    %c0_7 = arith.constant 0 : index
    %7 = vector.load %arg5[%c0_6, %c0_7] : memref<128x128xbf16, #tpu.memory_space<vmem>>, vector<128x128xbf16>
    %cst = arith.constant dense<0.000000e+00> : vector<64x128xf32>
    %8 = tpu.matmul %4, %7, %cst {dimension_numbers = #tpu.dot_dimension_numbers<[1], [0], [0], [1], [0, 0, 1, 1], [], []>} : vector<64x128xbf16>, vector<128x128xbf16>, vector<64x128xf32> -> vector<64x128xf32>
    %c0_8 = arith.constant 0 : index
    %c0_9 = arith.constant 0 : index
    %9 = vector.load %arg7[%c0_8, %c0_9] : memref<1x128xf32, #tpu.memory_space<vmem>>, vector<1x128xf32>
    %10 = vector.broadcast %9 : vector<1x128xf32> to vector<64x128xf32>
    %11 = arith.addf %8, %10 : vector<64x128xf32>
    %12 = vector.shape_cast %11 : vector<64x128xf32> to vector<8x8x128xf32>
    %c0_10 = arith.constant 0 : index
    %c0_11 = arith.constant 0 : index
    %13 = vector.load %arg6[%c0_10, %c0_11] : memref<128x128xbf16, #tpu.memory_space<vmem>>, vector<128x128xbf16>
    %cst_12 = arith.constant dense<0.000000e+00> : vector<64x128xf32>
    %14 = tpu.matmul %6, %13, %cst_12 {dimension_numbers = #tpu.dot_dimension_numbers<[1], [0], [0], [1], [0, 0, 1, 1], [], []>} : vector<64x128xbf16>, vector<128x128xbf16>, vector<64x128xf32> -> vector<64x128xf32>
    %c0_13 = arith.constant 0 : index
    %c0_14 = arith.constant 0 : index
    %15 = vector.load %arg8[%c0_13, %c0_14] : memref<1x128xf32, #tpu.memory_space<vmem>>, vector<1x128xf32>
    %16 = vector.broadcast %15 : vector<1x128xf32> to vector<64x128xf32>
    %17 = arith.addf %14, %16 : vector<64x128xf32>
    %18 = vector.shape_cast %17 : vector<64x128xf32> to vector<8x8x128xf32>
    %c0_15 = arith.constant 0 : index
    %c0_16 = arith.constant 0 : index
    %19 = vector.load %arg4[%c0_15, %c0_16] : memref<8x1xi32, #tpu.memory_space<vmem>>, vector<8x1xi32>
    %c0_17 = arith.constant 0 : index
    %c0_18 = arith.constant 0 : index
    %20 = vector.load %arg9[%c0_17, %c0_18] : memref<256x256xbf16, #tpu.memory_space<vmem>>, vector<256x256xbf16>
    %c8_i32 = arith.constant 8 : i32
    %21 = arith.muli %arg1, %c8_i32 : i32
    %c0_i32_19 = arith.constant 0 : i32
    %22 = arith.subi %c0_i32_19, %arg1 : i32
    %c8_i32_20 = arith.constant 8 : i32
    %23 = arith.muli %22, %c8_i32_20 : i32
    %c0_21 = arith.constant 0 : index
    %c0_22 = arith.constant 0 : index
    %24 = vector.load %arg10[%c0_21, %c0_22] : memref<8x256xf32, #tpu.memory_space<vmem>>, vector<8x256xf32>
    %25 = arith.truncf %24 : vector<8x256xf32> to vector<8x256xbf16>
    %cst_23 = arith.constant dense<0.000000e+00> : vector<8x256xf32>
    %26 = tpu.matmul %25, %20, %cst_23 {dimension_numbers = #tpu.dot_dimension_numbers<[1], [0], [0], [1], [0, 0, 1, 1], [], []>} : vector<8x256xbf16>, vector<256x256xbf16>, vector<8x256xf32> -> vector<8x256xf32>
    %27 = vector.extract_strided_slice %26 {offsets = [0, 0], sizes = [8, 128], strides = [1, 1]} : vector<8x256xf32> to vector<8x128xf32>
    %28 = vector.extract_strided_slice %12 {offsets = [0, 0, 0], sizes = [1, 8, 128], strides = [1, 1, 1]} : vector<8x8x128xf32> to vector<1x8x128xf32>
    %29 = vector.shape_cast %28 : vector<1x8x128xf32> to vector<8x128xf32>
    %30 = arith.addf %27, %29 : vector<8x128xf32>
    %31 = math.tanh %30 : vector<8x128xf32>
    %32 = vector.extract_strided_slice %26 {offsets = [0, 128], sizes = [8, 128], strides = [1, 1]} : vector<8x256xf32> to vector<8x128xf32>
    %33 = vector.extract_strided_slice %18 {offsets = [7, 0, 0], sizes = [1, 8, 128], strides = [1, 1, 1]} : vector<8x8x128xf32> to vector<1x8x128xf32>
    %34 = vector.shape_cast %33 : vector<1x8x128xf32> to vector<8x128xf32>
    %35 = arith.addf %32, %34 : vector<8x128xf32>
    %36 = math.tanh %35 : vector<8x128xf32>
    %c0_i32_24 = arith.constant 0 : i32
    %37 = arith.addi %21, %c0_i32_24 : i32
    %38 = vector.broadcast %37 : i32 to vector<8x1xi32>
    %39 = arith.cmpi slt, %38, %19 : vector<8x1xi32>
    %40 = vector.extract_strided_slice %24 {offsets = [0, 0], sizes = [8, 128], strides = [1, 1]} : vector<8x256xf32> to vector<8x128xf32>
    %41 = vector.shape_cast %39 : vector<8x1xi1> to vector<8x1xi1>
    %42 = vector.broadcast %41 : vector<8x1xi1> to vector<8x128xi1>
    %43 = arith.select %42, %31, %40 : vector<8x128xi1>, vector<8x128xf32>
    %c7_i32 = arith.constant 7 : i32
    %44 = arith.addi %23, %c7_i32 : i32
    %45 = vector.broadcast %44 : i32 to vector<8x1xi32>
    %46 = arith.cmpi slt, %45, %19 : vector<8x1xi32>
    %47 = vector.extract_strided_slice %24 {offsets = [0, 128], sizes = [8, 128], strides = [1, 1]} : vector<8x256xf32> to vector<8x128xf32>
    %48 = vector.shape_cast %46 : vector<8x1xi1> to vector<8x1xi1>
    %49 = vector.broadcast %48 : vector<8x1xi1> to vector<8x128xi1>
    %50 = arith.select %49, %36, %47 : vector<8x128xi1>, vector<8x128xf32>
    %51 = tpu.concatenate %43, %50 in 1 : vector<8x128xf32>, vector<8x128xf32> -> vector<8x256xf32>
    %52 = arith.truncf %51 : vector<8x256xf32> to vector<8x256xbf16>
    %cst_25 = arith.constant dense<0.000000e+00> : vector<8x256xf32>
    %53 = tpu.matmul %52, %20, %cst_25 {dimension_numbers = #tpu.dot_dimension_numbers<[1], [0], [0], [1], [0, 0, 1, 1], [], []>} : vector<8x256xbf16>, vector<256x256xbf16>, vector<8x256xf32> -> vector<8x256xf32>
    %54 = vector.extract_strided_slice %53 {offsets = [0, 0], sizes = [8, 128], strides = [1, 1]} : vector<8x256xf32> to vector<8x128xf32>
    %55 = vector.extract_strided_slice %12 {offsets = [1, 0, 0], sizes = [1, 8, 128], strides = [1, 1, 1]} : vector<8x8x128xf32> to vector<1x8x128xf32>
    %56 = vector.shape_cast %55 : vector<1x8x128xf32> to vector<8x128xf32>
    %57 = arith.addf %54, %56 : vector<8x128xf32>
    %58 = math.tanh %57 : vector<8x128xf32>
    %59 = vector.extract_strided_slice %53 {offsets = [0, 128], sizes = [8, 128], strides = [1, 1]} : vector<8x256xf32> to vector<8x128xf32>
    %60 = vector.extract_strided_slice %18 {offsets = [6, 0, 0], sizes = [1, 8, 128], strides = [1, 1, 1]} : vector<8x8x128xf32> to vector<1x8x128xf32>
    %61 = vector.shape_cast %60 : vector<1x8x128xf32> to vector<8x128xf32>
    %62 = arith.addf %59, %61 : vector<8x128xf32>
    %63 = math.tanh %62 : vector<8x128xf32>
    %c1_i32 = arith.constant 1 : i32
    %64 = arith.addi %21, %c1_i32 : i32
    %65 = vector.broadcast %64 : i32 to vector<8x1xi32>
    %66 = arith.cmpi slt, %65, %19 : vector<8x1xi32>
    %67 = vector.extract_strided_slice %51 {offsets = [0, 0], sizes = [8, 128], strides = [1, 1]} : vector<8x256xf32> to vector<8x128xf32>
    %68 = vector.shape_cast %66 : vector<8x1xi1> to vector<8x1xi1>
    %69 = vector.broadcast %68 : vector<8x1xi1> to vector<8x128xi1>
    %70 = arith.select %69, %58, %67 : vector<8x128xi1>, vector<8x128xf32>
    %c6_i32 = arith.constant 6 : i32
    %71 = arith.addi %23, %c6_i32 : i32
    %72 = vector.broadcast %71 : i32 to vector<8x1xi32>
    %73 = arith.cmpi slt, %72, %19 : vector<8x1xi32>
    %74 = vector.extract_strided_slice %51 {offsets = [0, 128], sizes = [8, 128], strides = [1, 1]} : vector<8x256xf32> to vector<8x128xf32>
    %75 = vector.shape_cast %73 : vector<8x1xi1> to vector<8x1xi1>
    %76 = vector.broadcast %75 : vector<8x1xi1> to vector<8x128xi1>
    %77 = arith.select %76, %63, %74 : vector<8x128xi1>, vector<8x128xf32>
    %78 = tpu.concatenate %70, %77 in 1 : vector<8x128xf32>, vector<8x128xf32> -> vector<8x256xf32>
    %79 = arith.truncf %78 : vector<8x256xf32> to vector<8x256xbf16>
    %cst_26 = arith.constant dense<0.000000e+00> : vector<8x256xf32>
    %80 = tpu.matmul %79, %20, %cst_26 {dimension_numbers = #tpu.dot_dimension_numbers<[1], [0], [0], [1], [0, 0, 1, 1], [], []>} : vector<8x256xbf16>, vector<256x256xbf16>, vector<8x256xf32> -> vector<8x256xf32>
    %81 = vector.extract_strided_slice %80 {offsets = [0, 0], sizes = [8, 128], strides = [1, 1]} : vector<8x256xf32> to vector<8x128xf32>
    %82 = vector.extract_strided_slice %12 {offsets = [2, 0, 0], sizes = [1, 8, 128], strides = [1, 1, 1]} : vector<8x8x128xf32> to vector<1x8x128xf32>
    %83 = vector.shape_cast %82 : vector<1x8x128xf32> to vector<8x128xf32>
    %84 = arith.addf %81, %83 : vector<8x128xf32>
    %85 = math.tanh %84 : vector<8x128xf32>
    %86 = vector.extract_strided_slice %80 {offsets = [0, 128], sizes = [8, 128], strides = [1, 1]} : vector<8x256xf32> to vector<8x128xf32>
    %87 = vector.extract_strided_slice %18 {offsets = [5, 0, 0], sizes = [1, 8, 128], strides = [1, 1, 1]} : vector<8x8x128xf32> to vector<1x8x128xf32>
    %88 = vector.shape_cast %87 : vector<1x8x128xf32> to vector<8x128xf32>
    %89 = arith.addf %86, %88 : vector<8x128xf32>
    %90 = math.tanh %89 : vector<8x128xf32>
    %c2_i32 = arith.constant 2 : i32
    %91 = arith.addi %21, %c2_i32 : i32
    %92 = vector.broadcast %91 : i32 to vector<8x1xi32>
    %93 = arith.cmpi slt, %92, %19 : vector<8x1xi32>
    %94 = vector.extract_strided_slice %78 {offsets = [0, 0], sizes = [8, 128], strides = [1, 1]} : vector<8x256xf32> to vector<8x128xf32>
    %95 = vector.shape_cast %93 : vector<8x1xi1> to vector<8x1xi1>
    %96 = vector.broadcast %95 : vector<8x1xi1> to vector<8x128xi1>
    %97 = arith.select %96, %85, %94 : vector<8x128xi1>, vector<8x128xf32>
    %c5_i32 = arith.constant 5 : i32
    %98 = arith.addi %23, %c5_i32 : i32
    %99 = vector.broadcast %98 : i32 to vector<8x1xi32>
    %100 = arith.cmpi slt, %99, %19 : vector<8x1xi32>
    %101 = vector.extract_strided_slice %78 {offsets = [0, 128], sizes = [8, 128], strides = [1, 1]} : vector<8x256xf32> to vector<8x128xf32>
    %102 = vector.shape_cast %100 : vector<8x1xi1> to vector<8x1xi1>
    %103 = vector.broadcast %102 : vector<8x1xi1> to vector<8x128xi1>
    %104 = arith.select %103, %90, %101 : vector<8x128xi1>, vector<8x128xf32>
    %105 = tpu.concatenate %97, %104 in 1 : vector<8x128xf32>, vector<8x128xf32> -> vector<8x256xf32>
    %106 = arith.truncf %105 : vector<8x256xf32> to vector<8x256xbf16>
    %cst_27 = arith.constant dense<0.000000e+00> : vector<8x256xf32>
    %107 = tpu.matmul %106, %20, %cst_27 {dimension_numbers = #tpu.dot_dimension_numbers<[1], [0], [0], [1], [0, 0, 1, 1], [], []>} : vector<8x256xbf16>, vector<256x256xbf16>, vector<8x256xf32> -> vector<8x256xf32>
    %108 = vector.extract_strided_slice %107 {offsets = [0, 0], sizes = [8, 128], strides = [1, 1]} : vector<8x256xf32> to vector<8x128xf32>
    %109 = vector.extract_strided_slice %12 {offsets = [3, 0, 0], sizes = [1, 8, 128], strides = [1, 1, 1]} : vector<8x8x128xf32> to vector<1x8x128xf32>
    %110 = vector.shape_cast %109 : vector<1x8x128xf32> to vector<8x128xf32>
    %111 = arith.addf %108, %110 : vector<8x128xf32>
    %112 = math.tanh %111 : vector<8x128xf32>
    %113 = vector.extract_strided_slice %107 {offsets = [0, 128], sizes = [8, 128], strides = [1, 1]} : vector<8x256xf32> to vector<8x128xf32>
    %114 = vector.extract_strided_slice %18 {offsets = [4, 0, 0], sizes = [1, 8, 128], strides = [1, 1, 1]} : vector<8x8x128xf32> to vector<1x8x128xf32>
    %115 = vector.shape_cast %114 : vector<1x8x128xf32> to vector<8x128xf32>
    %116 = arith.addf %113, %115 : vector<8x128xf32>
    %117 = math.tanh %116 : vector<8x128xf32>
    %c3_i32 = arith.constant 3 : i32
    %118 = arith.addi %21, %c3_i32 : i32
    %119 = vector.broadcast %118 : i32 to vector<8x1xi32>
    %120 = arith.cmpi slt, %119, %19 : vector<8x1xi32>
    %121 = vector.extract_strided_slice %105 {offsets = [0, 0], sizes = [8, 128], strides = [1, 1]} : vector<8x256xf32> to vector<8x128xf32>
    %122 = vector.shape_cast %120 : vector<8x1xi1> to vector<8x1xi1>
    %123 = vector.broadcast %122 : vector<8x1xi1> to vector<8x128xi1>
    %124 = arith.select %123, %112, %121 : vector<8x128xi1>, vector<8x128xf32>
    %c4_i32 = arith.constant 4 : i32
    %125 = arith.addi %23, %c4_i32 : i32
    %126 = vector.broadcast %125 : i32 to vector<8x1xi32>
    %127 = arith.cmpi slt, %126, %19 : vector<8x1xi32>
    %128 = vector.extract_strided_slice %105 {offsets = [0, 128], sizes = [8, 128], strides = [1, 1]} : vector<8x256xf32> to vector<8x128xf32>
    %129 = vector.shape_cast %127 : vector<8x1xi1> to vector<8x1xi1>
    %130 = vector.broadcast %129 : vector<8x1xi1> to vector<8x128xi1>
    %131 = arith.select %130, %117, %128 : vector<8x128xi1>, vector<8x128xf32>
    %132 = tpu.concatenate %124, %131 in 1 : vector<8x128xf32>, vector<8x128xf32> -> vector<8x256xf32>
    %133 = arith.truncf %132 : vector<8x256xf32> to vector<8x256xbf16>
    %cst_28 = arith.constant dense<0.000000e+00> : vector<8x256xf32>
    %134 = tpu.matmul %133, %20, %cst_28 {dimension_numbers = #tpu.dot_dimension_numbers<[1], [0], [0], [1], [0, 0, 1, 1], [], []>} : vector<8x256xbf16>, vector<256x256xbf16>, vector<8x256xf32> -> vector<8x256xf32>
    %135 = vector.extract_strided_slice %134 {offsets = [0, 0], sizes = [8, 128], strides = [1, 1]} : vector<8x256xf32> to vector<8x128xf32>
    %136 = vector.extract_strided_slice %12 {offsets = [4, 0, 0], sizes = [1, 8, 128], strides = [1, 1, 1]} : vector<8x8x128xf32> to vector<1x8x128xf32>
    %137 = vector.shape_cast %136 : vector<1x8x128xf32> to vector<8x128xf32>
    %138 = arith.addf %135, %137 : vector<8x128xf32>
    %139 = math.tanh %138 : vector<8x128xf32>
    %140 = vector.extract_strided_slice %134 {offsets = [0, 128], sizes = [8, 128], strides = [1, 1]} : vector<8x256xf32> to vector<8x128xf32>
    %141 = vector.extract_strided_slice %18 {offsets = [3, 0, 0], sizes = [1, 8, 128], strides = [1, 1, 1]} : vector<8x8x128xf32> to vector<1x8x128xf32>
    %142 = vector.shape_cast %141 : vector<1x8x128xf32> to vector<8x128xf32>
    %143 = arith.addf %140, %142 : vector<8x128xf32>
    %144 = math.tanh %143 : vector<8x128xf32>
    %c4_i32_29 = arith.constant 4 : i32
    %145 = arith.addi %21, %c4_i32_29 : i32
    %146 = vector.broadcast %145 : i32 to vector<8x1xi32>
    %147 = arith.cmpi slt, %146, %19 : vector<8x1xi32>
    %148 = vector.extract_strided_slice %132 {offsets = [0, 0], sizes = [8, 128], strides = [1, 1]} : vector<8x256xf32> to vector<8x128xf32>
    %149 = vector.shape_cast %147 : vector<8x1xi1> to vector<8x1xi1>
    %150 = vector.broadcast %149 : vector<8x1xi1> to vector<8x128xi1>
    %151 = arith.select %150, %139, %148 : vector<8x128xi1>, vector<8x128xf32>
    %c3_i32_30 = arith.constant 3 : i32
    %152 = arith.addi %23, %c3_i32_30 : i32
    %153 = vector.broadcast %152 : i32 to vector<8x1xi32>
    %154 = arith.cmpi slt, %153, %19 : vector<8x1xi32>
    %155 = vector.extract_strided_slice %132 {offsets = [0, 128], sizes = [8, 128], strides = [1, 1]} : vector<8x256xf32> to vector<8x128xf32>
    %156 = vector.shape_cast %154 : vector<8x1xi1> to vector<8x1xi1>
    %157 = vector.broadcast %156 : vector<8x1xi1> to vector<8x128xi1>
    %158 = arith.select %157, %144, %155 : vector<8x128xi1>, vector<8x128xf32>
    %159 = tpu.concatenate %151, %158 in 1 : vector<8x128xf32>, vector<8x128xf32> -> vector<8x256xf32>
    %160 = arith.truncf %159 : vector<8x256xf32> to vector<8x256xbf16>
    %cst_31 = arith.constant dense<0.000000e+00> : vector<8x256xf32>
    %161 = tpu.matmul %160, %20, %cst_31 {dimension_numbers = #tpu.dot_dimension_numbers<[1], [0], [0], [1], [0, 0, 1, 1], [], []>} : vector<8x256xbf16>, vector<256x256xbf16>, vector<8x256xf32> -> vector<8x256xf32>
    %162 = vector.extract_strided_slice %161 {offsets = [0, 0], sizes = [8, 128], strides = [1, 1]} : vector<8x256xf32> to vector<8x128xf32>
    %163 = vector.extract_strided_slice %12 {offsets = [5, 0, 0], sizes = [1, 8, 128], strides = [1, 1, 1]} : vector<8x8x128xf32> to vector<1x8x128xf32>
    %164 = vector.shape_cast %163 : vector<1x8x128xf32> to vector<8x128xf32>
    %165 = arith.addf %162, %164 : vector<8x128xf32>
    %166 = math.tanh %165 : vector<8x128xf32>
    %167 = vector.extract_strided_slice %161 {offsets = [0, 128], sizes = [8, 128], strides = [1, 1]} : vector<8x256xf32> to vector<8x128xf32>
    %168 = vector.extract_strided_slice %18 {offsets = [2, 0, 0], sizes = [1, 8, 128], strides = [1, 1, 1]} : vector<8x8x128xf32> to vector<1x8x128xf32>
    %169 = vector.shape_cast %168 : vector<1x8x128xf32> to vector<8x128xf32>
    %170 = arith.addf %167, %169 : vector<8x128xf32>
    %171 = math.tanh %170 : vector<8x128xf32>
    %c5_i32_32 = arith.constant 5 : i32
    %172 = arith.addi %21, %c5_i32_32 : i32
    %173 = vector.broadcast %172 : i32 to vector<8x1xi32>
    %174 = arith.cmpi slt, %173, %19 : vector<8x1xi32>
    %175 = vector.extract_strided_slice %159 {offsets = [0, 0], sizes = [8, 128], strides = [1, 1]} : vector<8x256xf32> to vector<8x128xf32>
    %176 = vector.shape_cast %174 : vector<8x1xi1> to vector<8x1xi1>
    %177 = vector.broadcast %176 : vector<8x1xi1> to vector<8x128xi1>
    %178 = arith.select %177, %166, %175 : vector<8x128xi1>, vector<8x128xf32>
    %c2_i32_33 = arith.constant 2 : i32
    %179 = arith.addi %23, %c2_i32_33 : i32
    %180 = vector.broadcast %179 : i32 to vector<8x1xi32>
    %181 = arith.cmpi slt, %180, %19 : vector<8x1xi32>
    %182 = vector.extract_strided_slice %159 {offsets = [0, 128], sizes = [8, 128], strides = [1, 1]} : vector<8x256xf32> to vector<8x128xf32>
    %183 = vector.shape_cast %181 : vector<8x1xi1> to vector<8x1xi1>
    %184 = vector.broadcast %183 : vector<8x1xi1> to vector<8x128xi1>
    %185 = arith.select %184, %171, %182 : vector<8x128xi1>, vector<8x128xf32>
    %186 = tpu.concatenate %178, %185 in 1 : vector<8x128xf32>, vector<8x128xf32> -> vector<8x256xf32>
    %187 = arith.truncf %186 : vector<8x256xf32> to vector<8x256xbf16>
    %cst_34 = arith.constant dense<0.000000e+00> : vector<8x256xf32>
    %188 = tpu.matmul %187, %20, %cst_34 {dimension_numbers = #tpu.dot_dimension_numbers<[1], [0], [0], [1], [0, 0, 1, 1], [], []>} : vector<8x256xbf16>, vector<256x256xbf16>, vector<8x256xf32> -> vector<8x256xf32>
    %189 = vector.extract_strided_slice %188 {offsets = [0, 0], sizes = [8, 128], strides = [1, 1]} : vector<8x256xf32> to vector<8x128xf32>
    %190 = vector.extract_strided_slice %12 {offsets = [6, 0, 0], sizes = [1, 8, 128], strides = [1, 1, 1]} : vector<8x8x128xf32> to vector<1x8x128xf32>
    %191 = vector.shape_cast %190 : vector<1x8x128xf32> to vector<8x128xf32>
    %192 = arith.addf %189, %191 : vector<8x128xf32>
    %193 = math.tanh %192 : vector<8x128xf32>
    %194 = vector.extract_strided_slice %188 {offsets = [0, 128], sizes = [8, 128], strides = [1, 1]} : vector<8x256xf32> to vector<8x128xf32>
    %195 = vector.extract_strided_slice %18 {offsets = [1, 0, 0], sizes = [1, 8, 128], strides = [1, 1, 1]} : vector<8x8x128xf32> to vector<1x8x128xf32>
    %196 = vector.shape_cast %195 : vector<1x8x128xf32> to vector<8x128xf32>
    %197 = arith.addf %194, %196 : vector<8x128xf32>
    %198 = math.tanh %197 : vector<8x128xf32>
    %c6_i32_35 = arith.constant 6 : i32
    %199 = arith.addi %21, %c6_i32_35 : i32
    %200 = vector.broadcast %199 : i32 to vector<8x1xi32>
    %201 = arith.cmpi slt, %200, %19 : vector<8x1xi32>
    %202 = vector.extract_strided_slice %186 {offsets = [0, 0], sizes = [8, 128], strides = [1, 1]} : vector<8x256xf32> to vector<8x128xf32>
    %203 = vector.shape_cast %201 : vector<8x1xi1> to vector<8x1xi1>
    %204 = vector.broadcast %203 : vector<8x1xi1> to vector<8x128xi1>
    %205 = arith.select %204, %193, %202 : vector<8x128xi1>, vector<8x128xf32>
    %c1_i32_36 = arith.constant 1 : i32
    %206 = arith.addi %23, %c1_i32_36 : i32
    %207 = vector.broadcast %206 : i32 to vector<8x1xi32>
    %208 = arith.cmpi slt, %207, %19 : vector<8x1xi32>
    %209 = vector.extract_strided_slice %186 {offsets = [0, 128], sizes = [8, 128], strides = [1, 1]} : vector<8x256xf32> to vector<8x128xf32>
    %210 = vector.shape_cast %208 : vector<8x1xi1> to vector<8x1xi1>
    %211 = vector.broadcast %210 : vector<8x1xi1> to vector<8x128xi1>
    %212 = arith.select %211, %198, %209 : vector<8x128xi1>, vector<8x128xf32>
    %213 = tpu.concatenate %205, %212 in 1 : vector<8x128xf32>, vector<8x128xf32> -> vector<8x256xf32>
    %214 = arith.truncf %213 : vector<8x256xf32> to vector<8x256xbf16>
    %cst_37 = arith.constant dense<0.000000e+00> : vector<8x256xf32>
    %215 = tpu.matmul %214, %20, %cst_37 {dimension_numbers = #tpu.dot_dimension_numbers<[1], [0], [0], [1], [0, 0, 1, 1], [], []>} : vector<8x256xbf16>, vector<256x256xbf16>, vector<8x256xf32> -> vector<8x256xf32>
    %216 = vector.extract_strided_slice %215 {offsets = [0, 0], sizes = [8, 128], strides = [1, 1]} : vector<8x256xf32> to vector<8x128xf32>
    %217 = vector.extract_strided_slice %12 {offsets = [7, 0, 0], sizes = [1, 8, 128], strides = [1, 1, 1]} : vector<8x8x128xf32> to vector<1x8x128xf32>
    %218 = vector.shape_cast %217 : vector<1x8x128xf32> to vector<8x128xf32>
    %219 = arith.addf %216, %218 : vector<8x128xf32>
    %220 = math.tanh %219 : vector<8x128xf32>
    %221 = vector.extract_strided_slice %215 {offsets = [0, 128], sizes = [8, 128], strides = [1, 1]} : vector<8x256xf32> to vector<8x128xf32>
    %222 = vector.extract_strided_slice %18 {offsets = [0, 0, 0], sizes = [1, 8, 128], strides = [1, 1, 1]} : vector<8x8x128xf32> to vector<1x8x128xf32>
    %223 = vector.shape_cast %222 : vector<1x8x128xf32> to vector<8x128xf32>
    %224 = arith.addf %221, %223 : vector<8x128xf32>
    %225 = math.tanh %224 : vector<8x128xf32>
    %c7_i32_38 = arith.constant 7 : i32
    %226 = arith.addi %21, %c7_i32_38 : i32
    %227 = vector.broadcast %226 : i32 to vector<8x1xi32>
    %228 = arith.cmpi slt, %227, %19 : vector<8x1xi32>
    %229 = vector.extract_strided_slice %213 {offsets = [0, 0], sizes = [8, 128], strides = [1, 1]} : vector<8x256xf32> to vector<8x128xf32>
    %230 = vector.shape_cast %228 : vector<8x1xi1> to vector<8x1xi1>
    %231 = vector.broadcast %230 : vector<8x1xi1> to vector<8x128xi1>
    %232 = arith.select %231, %220, %229 : vector<8x128xi1>, vector<8x128xf32>
    %c0_i32_39 = arith.constant 0 : i32
    %233 = arith.addi %23, %c0_i32_39 : i32
    %234 = vector.broadcast %233 : i32 to vector<8x1xi32>
    %235 = arith.cmpi slt, %234, %19 : vector<8x1xi32>
    %236 = vector.extract_strided_slice %213 {offsets = [0, 128], sizes = [8, 128], strides = [1, 1]} : vector<8x256xf32> to vector<8x128xf32>
    %237 = vector.shape_cast %235 : vector<8x1xi1> to vector<8x1xi1>
    %238 = vector.broadcast %237 : vector<8x1xi1> to vector<8x128xi1>
    %239 = arith.select %238, %225, %236 : vector<8x128xi1>, vector<8x128xf32>
    %240 = tpu.concatenate %232, %239 in 1 : vector<8x128xf32>, vector<8x128xf32> -> vector<8x256xf32>
    %c0_40 = arith.constant 0 : index
    %c0_41 = arith.constant 0 : index
    %241 = vector.load %arg10[%c0_40, %c0_41] : memref<8x256xf32, #tpu.memory_space<vmem>>, vector<8x256xf32>
    tpu.vector_store %arg10[%c0_40, %c0_41], %240 {strides = array<i32>} : memref<8x256xf32, #tpu.memory_space<vmem>>, vector<8x256xf32>,
    return
  }
  func.func @transform_0(%arg0: i32, %arg1: i32) -> (i32, i32, i32) {
    %c0_i32 = arith.constant 0 : i32
    %c0_i32_0 = arith.constant 0 : i32
    return %arg1, %arg0, %c0_i32 : i32, i32, i32
  }
  func.func @transform_1(%arg0: i32, %arg1: i32) -> (i32, i32, i32) {
    %c0_i32 = arith.constant 0 : i32
    %0 = arith.subi %c0_i32, %arg1 : i32
    %c0_i32_0 = arith.constant 0 : i32
    %c0_i32_1 = arith.constant 0 : i32
    return %0, %arg0, %c0_i32_0 : i32, i32, i32
  }
  func.func @transform_2(%arg0: i32, %arg1: i32) -> (i32, i32) {
    %c0_i32 = arith.constant 0 : i32
    %c0_i32_0 = arith.constant 0 : i32
    return %arg0, %c0_i32 : i32, i32
  }
  func.func @transform_3(%arg0: i32, %arg1: i32) -> (i32, i32) {
    %c0_i32 = arith.constant 0 : i32
    %c0_i32_0 = arith.constant 0 : i32
    %c0_i32_1 = arith.constant 0 : i32
    return %c0_i32, %c0_i32_0 : i32, i32
  }
  func.func @transform_4(%arg0: i32, %arg1: i32) -> (i32, i32) {
    %c0_i32 = arith.constant 0 : i32
    %c0_i32_0 = arith.constant 0 : i32
    %c0_i32_1 = arith.constant 0 : i32
    return %c0_i32, %c0_i32_0 : i32, i32
  }
  func.func @transform_5(%arg0: i32, %arg1: i32) -> (i32, i32) {
    %c0_i32 = arith.constant 0 : i32
    %c0_i32_0 = arith.constant 0 : i32
    %c0_i32_1 = arith.constant 0 : i32
    return %c0_i32, %c0_i32_0 : i32, i32
  }
  func.func @transform_6(%arg0: i32, %arg1: i32) -> (i32, i32) {
    %c0_i32 = arith.constant 0 : i32
    %c0_i32_0 = arith.constant 0 : i32
    %c0_i32_1 = arith.constant 0 : i32
    return %c0_i32, %c0_i32_0 : i32, i32
  }
  func.func @transform_7(%arg0: i32, %arg1: i32) -> (i32, i32) {
    %c0_i32 = arith.constant 0 : i32
    %c0_i32_0 = arith.constant 0 : i32
    %c0_i32_1 = arith.constant 0 : i32
    return %c0_i32, %c0_i32_0 : i32, i32
  }
  func.func @transform_8(%arg0: i32, %arg1: i32) -> (i32, i32) {
    %c0_i32 = arith.constant 0 : i32
    %c0_i32_0 = arith.constant 0 : i32
    return %arg0, %c0_i32 : i32, i32
  }
}

</mosaic_0001>

<llo_original>
// kernel: tpu_custom_call.1
$region0: #{tpu_custom_call.1}
  #allocation0 [shape = 'u32[]', space=smem, size = 0x4, offset = 0x4, fixed_abs, tag = 'smem constant byte address 0x4 - core index']
  #allocation1 [shape = 'u32[144,128]{1,0:T(1,128)}', space=vmem, size = 0x12000, scoped, tag = 'internal scratch']
  %s0 = inlined_call_operand.hbm [shape: bf16[8,8,128], index: 0, kind: input, shape index: {}]
  %s1 = inlined_call_operand.hbm [shape: bf16[8,8,128], index: 1, kind: input, shape index: {}]
  %s2 = inlined_call_operand.vmem [shape: s32[8,1], index: 2, kind: input, shape index: {}]
  %s3 = inlined_call_operand.hbm [shape: bf16[128,128], index: 3, kind: input, shape index: {}]
  %s4 = inlined_call_operand.hbm [shape: bf16[128,128], index: 4, kind: input, shape index: {}]
  %s5 = inlined_call_operand.vmem [shape: f32[1,128], index: 5, kind: input, shape index: {}]
  %s6 = inlined_call_operand.vmem [shape: f32[1,128], index: 6, kind: input, shape index: {}]
  %s7 = inlined_call_operand.hbm [shape: bf16[256,256], index: 7, kind: input, shape index: {}]
  %s8 = inlined_call_operand.hbm [shape: f32[8,256], index: 8, kind: output, shape index: {}]
  %s9 = sld [smem:[#allocation0]]
  $region66: #{tpu_custom_call.1} parent=0
    _
  %s11 = ssub.s32 1, %s9
  %s12 = scalar_select 0, %s11, %s9
  $region1: #{tpu_custom_call.1} parent=0
    #allocation2 [shape = 'u8[16384]{0}', space=vmem, size = 0x4000, scoped, tag = 'input window, operand 0, single buffered']
    #allocation3 [shape = 's32[1]{0}', space=sflag, size = 0x4, scoped, tag = 'scoped memory for tpu_custom_call.1']
    #allocation4 [shape = 's32[1]{0}', space=sflag, size = 0x4, scoped, tag = 'scoped memory for tpu_custom_call.1']
    #allocation5 [shape = 'u8[16384]{0}', space=vmem, size = 0x4000, scoped, tag = 'input window, operand 1, single buffered']
    #allocation6 [shape = 's32[1]{0}', space=sflag, size = 0x4, scoped, tag = 'scoped memory for tpu_custom_call.1']
    #allocation7 [shape = 'u8[32768]{0}', space=vmem, size = 0x8000, scoped, tag = 'input window, operand 3, single buffered']
    #allocation8 [shape = 'u8[32768]{0}', space=vmem, size = 0x8000, scoped, tag = 'input window, operand 4, single buffered']
    #allocation9 [shape = 's32[1]{0}', space=sflag, size = 0x4, scoped, tag = 'scoped memory for tpu_custom_call.1']
    #allocation10 [shape = 'u8[131072]{0}', space=vmem, size = 0x20000, scoped, tag = 'input window, operand 7, single buffered']
    #allocation11 [shape = 'u8[8192]{0}', space=vmem, size = 0x2000, scoped, tag = 'output window, operand 0, single buffered']
    %13 = vsyncpa [#allocation3], 0
    %14 = vsyncpa [#allocation6], 0
    %15 = vsyncpa [#allocation9], 0
    %16 = vsyncpa [#allocation4], 0
    // Predicated region
    $region2: #{tpu_custom_call.1} parent=1 // pred_check
      _
    $region3: #{tpu_custom_call.1} parent=1 // pred_check_branch
      %18 = sbr.rel (0) target = $region5
    $region4: #{tpu_custom_call.1} parent=1 // pred_region
      %s20 = ssub.s32 512, 512
      %21 = vsyncadd [#allocation3], %s20
      %s22 = sshll.u32 [#allocation2], 4
      %s23 = int_to_ptr.vmem [resolvable:$true] %s22
      %28 = dma.hbm_to_vmem [thread:$0]  %s0, 512, %s23, [#allocation3], 64, 64, 4
    $region5: #{tpu_custom_call.1} parent=1 // pred_fallthru
      _
    // Predicated region
    $region6: #{tpu_custom_call.1} parent=1 // pred_check
      _
    $region7: #{tpu_custom_call.1} parent=1 // pred_check_branch
      %30 = sbr.rel (0) target = $region9
    $region8: #{tpu_custom_call.1} parent=1 // pred_region
      %s31 = ssub.s32 0, 0
      %s32 = smul.u32 8, %s31
      %s34 = ssub.s32 512, 512
      %35 = vsyncadd [#allocation6], %s34
      %s36 = smul.addr %s32, 64
      %s37 = scalar_lea.hbm %s1, %s36
      %s38 = sshll.u32 [#allocation5], 4
      %s39 = int_to_ptr.vmem [resolvable:$true] %s38
      %44 = dma.hbm_to_vmem [thread:$0]  %s37, 512, %s39, [#allocation6], 64, 64, 4
    $region9: #{tpu_custom_call.1} parent=1 // pred_fallthru
      _
    // Predicated region
    $region10: #{tpu_custom_call.1} parent=1 // pred_check
      _
    $region11: #{tpu_custom_call.1} parent=1 // pred_check_branch
      %46 = sbr.rel (0) target = $region13
    $region12: #{tpu_custom_call.1} parent=1 // pred_region
      _
    $region13: #{tpu_custom_call.1} parent=1 // pred_fallthru
      _
    // Predicated region
    $region14: #{tpu_custom_call.1} parent=1 // pred_check
      _
    $region15: #{tpu_custom_call.1} parent=1 // pred_check_branch
      %48 = sbr.rel (0) target = $region17
    $region16: #{tpu_custom_call.1} parent=1 // pred_region
      %s50 = ssub.s32 1024, 1024
      %51 = vsyncadd [#allocation6], %s50
      %s52 = sshll.u32 [#allocation7], 4
      %s53 = int_to_ptr.vmem [resolvable:$true] %s52
      %58 = dma.hbm_to_vmem [thread:$0]  %s3, 1024, %s53, [#allocation6], 64, 64, 4
    $region17: #{tpu_custom_call.1} parent=1 // pred_fallthru
      _
    // Predicated region
    $region18: #{tpu_custom_call.1} parent=1 // pred_check
      _
    $region19: #{tpu_custom_call.1} parent=1 // pred_check_branch
      %60 = sbr.rel (0) target = $region21
    $region20: #{tpu_custom_call.1} parent=1 // pred_region
      %s62 = ssub.s32 1024, 1024
      %63 = vsyncadd [#allocation9], %s62
      %s64 = sshll.u32 [#allocation8], 4
      %s65 = int_to_ptr.vmem [resolvable:$true] %s64
      %70 = dma.hbm_to_vmem [thread:$0]  %s4, 1024, %s65, [#allocation9], 64, 64, 4
    $region21: #{tpu_custom_call.1} parent=1 // pred_fallthru
      _
    // Predicated region
    $region22: #{tpu_custom_call.1} parent=1 // pred_check
      _
    $region23: #{tpu_custom_call.1} parent=1 // pred_check_branch
      %72 = sbr.rel (0) target = $region25
    $region24: #{tpu_custom_call.1} parent=1 // pred_region
      _
    $region25: #{tpu_custom_call.1} parent=1 // pred_fallthru
      _
    // Predicated region
    $region26: #{tpu_custom_call.1} parent=1 // pred_check
      _
    $region27: #{tpu_custom_call.1} parent=1 // pred_check_branch
      %74 = sbr.rel (0) target = $region29
    $region28: #{tpu_custom_call.1} parent=1 // pred_region
      _
    $region29: #{tpu_custom_call.1} parent=1 // pred_fallthru
      _
    // Predicated region
    $region30: #{tpu_custom_call.1} parent=1 // pred_check
      _
    $region31: #{tpu_custom_call.1} parent=1 // pred_check_branch
      %76 = sbr.rel (0) target = $region33
    $region32: #{tpu_custom_call.1} parent=1 // pred_region
      %s78 = ssub.s32 4096, 4096
      %79 = vsyncadd [#allocation9], %s78
      %s80 = sshll.u32 [#allocation10], 4
      %s81 = int_to_ptr.vmem [resolvable:$true] %s80
      %86 = dma.hbm_to_vmem [thread:$0]  %s7, 4096, %s81, [#allocation9], 128, 128, 8
    $region33: #{tpu_custom_call.1} parent=1 // pred_fallthru
      _
    // Predicated region
    $region34: #{tpu_custom_call.1} parent=1 // pred_check
      _
    $region35: #{tpu_custom_call.1} parent=1 // pred_check_branch
      %88 = sbr.rel (0) target = $region37
    $region36: #{tpu_custom_call.1} parent=1 // pred_region
      %89 = dma.done [#allocation3], 512
    $region37: #{tpu_custom_call.1} parent=1 // pred_fallthru
      _
    // Predicated region
    $region38: #{tpu_custom_call.1} parent=1 // pred_check
      _
    $region39: #{tpu_custom_call.1} parent=1 // pred_check_branch
      %91 = sbr.rel (0) target = $region41
    $region40: #{tpu_custom_call.1} parent=1 // pred_region
      %92 = dma.done [#allocation6], 512
    $region41: #{tpu_custom_call.1} parent=1 // pred_fallthru
      _
    // Predicated region
    $region42: #{tpu_custom_call.1} parent=1 // pred_check
      _
    $region43: #{tpu_custom_call.1} parent=1 // pred_check_branch
      %94 = sbr.rel (0) target = $region45
    $region44: #{tpu_custom_call.1} parent=1 // pred_region
      %95 = dma.done [#allocation6], 1024
    $region45: #{tpu_custom_call.1} parent=1 // pred_fallthru
      _
    // Predicated region
    $region46: #{tpu_custom_call.1} parent=1 // pred_check
      _
    $region47: #{tpu_custom_call.1} parent=1 // pred_check_branch
      %97 = sbr.rel (0) target = $region49
    $region48: #{tpu_custom_call.1} parent=1 // pred_region
      %98 = dma.done [#allocation9], 1024
    $region49: #{tpu_custom_call.1} parent=1 // pred_fallthru
      _
    // Predicated region
    $region50: #{tpu_custom_call.1} parent=1 // pred_check
      _
    $region51: #{tpu_custom_call.1} parent=1 // pred_check_branch
      %100 = sbr.rel (0) target = $region53
    $region52: #{tpu_custom_call.1} parent=1 // pred_region
      %101 = dma.done [#allocation9], 4096
    $region53: #{tpu_custom_call.1} parent=1 // pred_fallthru
      _
    %s102 = ssub.s32 0, 0
    %s103 = smul.u32 8, %s102
    %p105 = scmp.eq.s32.totalorder 0, 0
    // Predicated region
    $region54: #{tpu_custom_call.1} parent=1 // pred_check
      %p106 = pneg %p105
    $region55: #{tpu_custom_call.1} parent=1 // pred_check_branch
      %108 = sbr.rel (%p106) target = $region57
    $region56: #{tpu_custom_call.1} parent=1 // pred_region
      %109 = vst [vmem:[#allocation11] sm:$0xff] 0.0
      %110 = vst [vmem:[#allocation11 + $0x8] sm:$0xff] 0.0
    $region57: #{tpu_custom_call.1} parent=1 // pred_fallthru
      _
    %v111 = vld [vmem:[#allocation2] sm:$0xf]
    %v112 = vld [vmem:[#allocation2 + $0x4] sm:$0xf]
    %v113 = vld [vmem:[#allocation2 + $0x8] sm:$0xf]
    %v114 = vld [vmem:[#allocation2 + $0xc] sm:$0xf]
    %v115 = vld [vmem:[#allocation2 + $0x10] sm:$0xf]
    %v116 = vld [vmem:[#allocation2 + $0x14] sm:$0xf]
    %v117 = vld [vmem:[#allocation2 + $0x18] sm:$0xf]
    %v118 = vld [vmem:[#allocation2 + $0x1c] sm:$0xf]
    %v119 = vld [vmem:[#allocation5] sm:$0xf]
    %v120 = vld [vmem:[#allocation5 + $0x4] sm:$0xf]
    %v121 = vld [vmem:[#allocation5 + $0x8] sm:$0xf]
    %v122 = vld [vmem:[#allocation5 + $0xc] sm:$0xf]
    %v123 = vld [vmem:[#allocation5 + $0x10] sm:$0xf]
    %v124 = vld [vmem:[#allocation5 + $0x14] sm:$0xf]
    %v125 = vld [vmem:[#allocation5 + $0x18] sm:$0xf]
    %v126 = vld [vmem:[#allocation5 + $0x1c] sm:$0xf]
    %v127 = vld [vmem:[#allocation7] sm:$0xf]
    %v128 = vld [vmem:[#allocation7 + $0x4] sm:$0xf]
    %v129 = vld [vmem:[#allocation7 + $0x8] sm:$0xf]
    %v130 = vld [vmem:[#allocation7 + $0xc] sm:$0xf]
    %v131 = vld [vmem:[#allocation7 + $0x10] sm:$0xf]
    %v132 = vld [vmem:[#allocation7 + $0x14] sm:$0xf]
    %v133 = vld [vmem:[#allocation7 + $0x18] sm:$0xf]
    %v134 = vld [vmem:[#allocation7 + $0x1c] sm:$0xf]
    %v135 = vld [vmem:[#allocation7 + $0x20] sm:$0xf]
    %v136 = vld [vmem:[#allocation7 + $0x24] sm:$0xf]
    %v137 = vld [vmem:[#allocation7 + $0x28] sm:$0xf]
    %v138 = vld [vmem:[#allocation7 + $0x2c] sm:$0xf]
    %v139 = vld [vmem:[#allocation7 + $0x30] sm:$0xf]
    %v140 = vld [vmem:[#allocation7 + $0x34] sm:$0xf]
    %v141 = vld [vmem:[#allocation7 + $0x38] sm:$0xf]
    %v142 = vld [vmem:[#allocation7 + $0x3c] sm:$0xf]
    %v143 = vld [vmem:[%s5] sm:$0x1]
    %v145 = vlaneseq
    %v146 = vshrl.u32 %v145, 7
    %v147 = vsub.s32 0, %v146
    %v148 = vrot.slane %v143, %v147
    %v158 = vunpack.c.l.b16 %v111
    %v159 = vunpack.c.l.b16 %v112
    %v160 = vunpack.c.l.b16 %v113
    %v161 = vunpack.c.l.b16 %v114
    %v162 = vunpack.c.l.b16 %v115
    %v163 = vunpack.c.l.b16 %v116
    %v164 = vunpack.c.l.b16 %v117
    %v165 = vunpack.c.l.b16 %v118
    %v166 = vpack.c.b16 %v159, %v158
    %v167 = vpack.c.b16 %v161, %v160
    %v168 = vpack.c.b16 %v163, %v162
    %v169 = vpack.c.b16 %v165, %v164
    %v190 = vunpack.c.l.b16 %v127
    %v191 = vunpack.c.l.b16 %v128
    %v192 = vunpack.c.l.b16 %v129
    %v193 = vunpack.c.l.b16 %v130
    %v194 = vunpack.c.l.b16 %v131
    %v195 = vunpack.c.l.b16 %v132
    %v196 = vunpack.c.l.b16 %v133
    %v197 = vunpack.c.l.b16 %v134
    %v198 = vunpack.c.l.b16 %v135
    %v199 = vunpack.c.l.b16 %v136
    %v200 = vunpack.c.l.b16 %v137
    %v201 = vunpack.c.l.b16 %v138
    %v202 = vunpack.c.l.b16 %v139
    %v203 = vunpack.c.l.b16 %v140
    %v204 = vunpack.c.l.b16 %v141
    %v205 = vunpack.c.l.b16 %v142
    %v206 = vpack.c.b16 %v191, %v190
    %v207 = vpack.c.b16 %v193, %v192
    %v208 = vpack.c.b16 %v195, %v194
    %v209 = vpack.c.b16 %v197, %v196
    %v210 = vpack.c.b16 %v199, %v198
    %v211 = vpack.c.b16 %v201, %v200
    %v212 = vpack.c.b16 %v203, %v202
    %v213 = vpack.c.b16 %v205, %v204
    %222 = vmatprep.subr.bf16.mxu0 0
    %223 = vmatpush1.bf16.msra.mxu0 %v213
    %224 = vmatprep.subr.bf16.mxu0 0
    %225 = vmatpush1.bf16.msra.mxu0 %v212
    %226 = vmatprep.subr.bf16.mxu0 0
    %227 = vmatpush1.bf16.msra.mxu0 %v211
    %228 = vmatprep.subr.bf16.mxu0 0
    %229 = vmatpush1.bf16.msra.mxu0 %v210
    %230 = vmatprep.subr.bf16.mxu0 0
    %231 = vmatpush1.bf16.msra.mxu0 %v209
    %232 = vmatprep.subr.bf16.mxu0 0
    %233 = vmatpush1.bf16.msra.mxu0 %v208
    %234 = vmatprep.subr.bf16.mxu0 0
    %235 = vmatpush1.bf16.msra.mxu0 %v207
    %236 = vmatprep.subr.bf16.mxu0 0
    %237 = vmatpush1.bf16.msra.mxu0 %v206
    %238 = vmatprep.subr.bf16.mxu0 0
    %239 = vmatpush2.bf16.msra.mxu0 0
    %240 = vmatprep.subr.bf16.mxu0 0
    %241 = vmatpush2.bf16.msra.mxu0 0
    %242 = vmatprep.subr.bf16.mxu0 0
    %243 = vmatpush2.bf16.msra.mxu0 0
    %244 = vmatprep.subr.bf16.mxu0 0
    %245 = vmatpush2.bf16.msra.mxu0 0
    %246 = vmatprep.subr.bf16.mxu0 0
    %247 = vmatpush2.bf16.msra.mxu0 0
    %248 = vmatprep.subr.bf16.mxu0 0
    %249 = vmatpush2.bf16.msra.mxu0 0
    %250 = vmatprep.subr.bf16.mxu0 0
    %251 = vmatpush2.bf16.msra.mxu0 0
    %252 = vmatprep.subr.bf16.mxu0 0
    %253 = vmatpush2.bf16.msra.mxu0 0
    %254 = vmatprep.mubr.bf16.mxu0 0
    %255 = vmatmul.mubr.bf16.gmra.mxu0 %v166
    %v256 = vpop.f32.mrf.mxu0
    %v257 = vadd.f32 %v148, %v256
    %v258 = vpop.f32.mrf.mxu0
    %v259 = vpop.f32.mrf.mxu0
    %v260 = vadd.f32 %v148, %v259
    %v261 = vpop.f32.mrf.mxu0
    %262 = vmatprep.mubr.bf16.mxu0 0
    %263 = vmatmul.mubr.bf16.gmra.mxu0 %v167
    %v264 = vpop.f32.mrf.mxu0
    %v265 = vadd.f32 %v148, %v264
    %v266 = vpop.f32.mrf.mxu0
    %v267 = vpop.f32.mrf.mxu0
    %v268 = vadd.f32 %v148, %v267
    %v269 = vpop.f32.mrf.mxu0
    %270 = vmatprep.mubr.bf16.mxu0 0
    %271 = vmatmul.mubr.bf16.gmra.mxu0 %v168
    %v272 = vpop.f32.mrf.mxu0
    %v273 = vadd.f32 %v148, %v272
    %v274 = vpop.f32.mrf.mxu0
    %v275 = vpop.f32.mrf.mxu0
    %v276 = vadd.f32 %v148, %v275
    %v277 = vpop.f32.mrf.mxu0
    %278 = vmatprep.mubr.bf16.mxu0 0
    %279 = vmatmul.mubr.bf16.gmra.mxu0 %v169
    %v280 = vpop.f32.mrf.mxu0
    %v281 = vadd.f32 %v148, %v280
    %v282 = vpop.f32.mrf.mxu0
    %v283 = vpop.f32.mrf.mxu0
    %v284 = vadd.f32 %v148, %v283
    %v285 = vpop.f32.mrf.mxu0
    %286 = vdwg.mxu0
    %v287 = vld [vmem:[#allocation8] sm:$0xf]
    %v288 = vld [vmem:[#allocation8 + $0x4] sm:$0xf]
    %v289 = vld [vmem:[#allocation8 + $0x8] sm:$0xf]
    %v290 = vld [vmem:[#allocation8 + $0xc] sm:$0xf]
    %v291 = vld [vmem:[#allocation8 + $0x10] sm:$0xf]
    %v292 = vld [vmem:[#allocation8 + $0x14] sm:$0xf]
    %v293 = vld [vmem:[#allocation8 + $0x18] sm:$0xf]
    %v294 = vld [vmem:[#allocation8 + $0x1c] sm:$0xf]
    %v295 = vld [vmem:[#allocation8 + $0x20] sm:$0xf]
    %v296 = vld [vmem:[#allocation8 + $0x24] sm:$0xf]
    %v297 = vld [vmem:[#allocation8 + $0x28] sm:$0xf]
    %v298 = vld [vmem:[#allocation8 + $0x2c] sm:$0xf]
    %v299 = vld [vmem:[#allocation8 + $0x30] sm:$0xf]
    %v300 = vld [vmem:[#allocation8 + $0x34] sm:$0xf]
    %v301 = vld [vmem:[#allocation8 + $0x38] sm:$0xf]
    %v302 = vld [vmem:[#allocation8 + $0x3c] sm:$0xf]
    %v303 = vld [vmem:[%s6] sm:$0x1]
    %v305 = vlaneseq
    %v306 = vshrl.u32 %v305, 7
    %v307 = vsub.s32 0, %v306
    %v308 = vrot.slane %v303, %v307
    %v318 = vunpack.c.l.b16 %v119
    %v319 = vunpack.c.l.b16 %v120
    %v320 = vunpack.c.l.b16 %v121
    %v321 = vunpack.c.l.b16 %v122
    %v322 = vunpack.c.l.b16 %v123
    %v323 = vunpack.c.l.b16 %v124
    %v324 = vunpack.c.l.b16 %v125
    %v325 = vunpack.c.l.b16 %v126
    %v326 = vpack.c.b16 %v319, %v318
    %v327 = vpack.c.b16 %v321, %v320
    %v328 = vpack.c.b16 %v323, %v322
    %v329 = vpack.c.b16 %v325, %v324
    %v350 = vunpack.c.l.b16 %v287
    %v351 = vunpack.c.l.b16 %v288
    %v352 = vunpack.c.l.b16 %v289
    %v353 = vunpack.c.l.b16 %v290
    %v354 = vunpack.c.l.b16 %v291
    %v355 = vunpack.c.l.b16 %v292
    %v356 = vunpack.c.l.b16 %v293
    %v357 = vunpack.c.l.b16 %v294
    %v358 = vunpack.c.l.b16 %v295
    %v359 = vunpack.c.l.b16 %v296
    %v360 = vunpack.c.l.b16 %v297
    %v361 = vunpack.c.l.b16 %v298
    %v362 = vunpack.c.l.b16 %v299
    %v363 = vunpack.c.l.b16 %v300
    %v364 = vunpack.c.l.b16 %v301
    %v365 = vunpack.c.l.b16 %v302
    %v366 = vpack.c.b16 %v351, %v350
    %v367 = vpack.c.b16 %v353, %v352
    %v368 = vpack.c.b16 %v355, %v354
    %v369 = vpack.c.b16 %v357, %v356
    %v370 = vpack.c.b16 %v359, %v358
    %v371 = vpack.c.b16 %v361, %v360
    %v372 = vpack.c.b16 %v363, %v362
    %v373 = vpack.c.b16 %v365, %v364
    %382 = vmatprep.subr.bf16.mxu0 0
    %383 = vmatpush1.bf16.msra.mxu0 %v373
    %384 = vmatprep.subr.bf16.mxu0 0
    %385 = vmatpush1.bf16.msra.mxu0 %v372
    %386 = vmatprep.subr.bf16.mxu0 0
    %387 = vmatpush1.bf16.msra.mxu0 %v371
    %388 = vmatprep.subr.bf16.mxu0 0
    %389 = vmatpush1.bf16.msra.mxu0 %v370
    %390 = vmatprep.subr.bf16.mxu0 0
    %391 = vmatpush1.bf16.msra.mxu0 %v369
    %392 = vmatprep.subr.bf16.mxu0 0
    %393 = vmatpush1.bf16.msra.mxu0 %v368
    %394 = vmatprep.subr.bf16.mxu0 0
    %395 = vmatpush1.bf16.msra.mxu0 %v367
    %396 = vmatprep.subr.bf16.mxu0 0
    %397 = vmatpush1.bf16.msra.mxu0 %v366
    %398 = vmatprep.subr.bf16.mxu0 0
    %399 = vmatpush2.bf16.msra.mxu0 0
    %400 = vmatprep.subr.bf16.mxu0 0
    %401 = vmatpush2.bf16.msra.mxu0 0
    %402 = vmatprep.subr.bf16.mxu0 0
    %403 = vmatpush2.bf16.msra.mxu0 0
    %404 = vmatprep.subr.bf16.mxu0 0
    %405 = vmatpush2.bf16.msra.mxu0 0
    %406 = vmatprep.subr.bf16.mxu0 0
    %407 = vmatpush2.bf16.msra.mxu0 0
    %408 = vmatprep.subr.bf16.mxu0 0
    %409 = vmatpush2.bf16.msra.mxu0 0
    %410 = vmatprep.subr.bf16.mxu0 0
    %411 = vmatpush2.bf16.msra.mxu0 0
    %412 = vmatprep.subr.bf16.mxu0 0
    %413 = vmatpush2.bf16.msra.mxu0 0
    %414 = vmatprep.mubr.bf16.mxu0 0
    %415 = vmatmul.mubr.bf16.gmra.mxu0 %v326
    %v416 = vpop.f32.mrf.mxu0
    %v417 = vadd.f32 %v308, %v416
    %v418 = vpop.f32.mrf.mxu0
    %v419 = vpop.f32.mrf.mxu0
    %v420 = vadd.f32 %v308, %v419
    %v421 = vpop.f32.mrf.mxu0
    %422 = vmatprep.mubr.bf16.mxu0 0
    %423 = vmatmul.mubr.bf16.gmra.mxu0 %v327
    %v424 = vpop.f32.mrf.mxu0
    %v425 = vadd.f32 %v308, %v424
    %v426 = vpop.f32.mrf.mxu0
    %v427 = vpop.f32.mrf.mxu0
    %v428 = vadd.f32 %v308, %v427
    %v429 = vpop.f32.mrf.mxu0
    %430 = vmatprep.mubr.bf16.mxu0 0
    %431 = vmatmul.mubr.bf16.gmra.mxu0 %v328
    %v432 = vpop.f32.mrf.mxu0
    %v433 = vadd.f32 %v308, %v432
    %v434 = vpop.f32.mrf.mxu0
    %v435 = vpop.f32.mrf.mxu0
    %v436 = vadd.f32 %v308, %v435
    %v437 = vpop.f32.mrf.mxu0
    %438 = vmatprep.mubr.bf16.mxu0 0
    %439 = vmatmul.mubr.bf16.gmra.mxu0 %v329
    %v440 = vpop.f32.mrf.mxu0
    %v441 = vadd.f32 %v308, %v440
    %v442 = vpop.f32.mrf.mxu0
    %v443 = vpop.f32.mrf.mxu0
    %v444 = vadd.f32 %v308, %v443
    %v445 = vpop.f32.mrf.mxu0
    %446 = vdwg.mxu0
    %v447 = vld [vmem:[%s2] sm:$0xff]
    %v448 = vld [vmem:[#allocation10] sm:$0xff]
    %v449 = vld [vmem:[#allocation10 + $0x8] sm:$0xff]
    %v450 = vld [vmem:[#allocation10 + $0x10] sm:$0xff]
    %v451 = vld [vmem:[#allocation10 + $0x18] sm:$0xff]
    %v452 = vld [vmem:[#allocation10 + $0x20] sm:$0xff]
    %v453 = vld [vmem:[#allocation10 + $0x28] sm:$0xff]
    %v454 = vld [vmem:[#allocation10 + $0x30] sm:$0xff]
    %v455 = vld [vmem:[#allocation10 + $0x38] sm:$0xff]
    %v456 = vld [vmem:[#allocation10 + $0x40] sm:$0xff]
    %v457 = vld [vmem:[#allocation10 + $0x48] sm:$0xff]
    %v458 = vld [vmem:[#allocation10 + $0x50] sm:$0xff]
    %v459 = vld [vmem:[#allocation10 + $0x58] sm:$0xff]
    %v460 = vld [vmem:[#allocation10 + $0x60] sm:$0xff]
    %v461 = vld [vmem:[#allocation10 + $0x68] sm:$0xff]
    %v462 = vld [vmem:[#allocation10 + $0x70] sm:$0xff]
    %v463 = vld [vmem:[#allocation10 + $0x78] sm:$0xff]
    %v464 = vld [vmem:[#allocation10 + $0x80] sm:$0xff]
    %v465 = vld [vmem:[#allocation10 + $0x88] sm:$0xff]
    %v466 = vld [vmem:[#allocation10 + $0x90] sm:$0xff]
    %v467 = vld [vmem:[#allocation10 + $0x98] sm:$0xff]
    %v468 = vld [vmem:[#allocation10 + $0xa0] sm:$0xff]
    %v469 = vld [vmem:[#allocation10 + $0xa8] sm:$0xff]
    %v470 = vld [vmem:[#allocation10 + $0xb0] sm:$0xff]
    %v471 = vld [vmem:[#allocation10 + $0xb8] sm:$0xff]
    %v472 = vld [vmem:[#allocation10 + $0xc0] sm:$0xff]
    %v473 = vld [vmem:[#allocation10 + $0xc8] sm:$0xff]
    %v474 = vld [vmem:[#allocation10 + $0xd0] sm:$0xff]
    %v475 = vld [vmem:[#allocation10 + $0xd8] sm:$0xff]
    %v476 = vld [vmem:[#allocation10 + $0xe0] sm:$0xff]
    %v477 = vld [vmem:[#allocation10 + $0xe8] sm:$0xff]
    %v478 = vld [vmem:[#allocation10 + $0xf0] sm:$0xff]
    %v479 = vld [vmem:[#allocation10 + $0xf8] sm:$0xff]
    %s480 = smul.u32 0, 8
    %s481 = ssub.s32 0, 0
    %s482 = smul.u32 %s481, 8
    %v483 = vld [vmem:[#allocation11] sm:$0xff]
    %v484 = vld [vmem:[#allocation11 + $0x8] sm:$0xff]
    %v485 = vpack.c.bf16 %v483, %v483
    %v486 = vpack.c.bf16 %v484, %v484
    %v519 = vunpack.c.l.b16 %v448
    %v520 = vunpack.c.h.b16 %v448
    %v521 = vunpack.c.l.b16 %v449
    %v522 = vunpack.c.h.b16 %v449
    %v523 = vunpack.c.l.b16 %v450
    %v524 = vunpack.c.h.b16 %v450
    %v525 = vunpack.c.l.b16 %v451
    %v526 = vunpack.c.h.b16 %v451
    %v527 = vunpack.c.l.b16 %v452
    %v528 = vunpack.c.h.b16 %v452
    %v529 = vunpack.c.l.b16 %v453
    %v530 = vunpack.c.h.b16 %v453
    %v531 = vunpack.c.l.b16 %v454
    %v532 = vunpack.c.h.b16 %v454
    %v533 = vunpack.c.l.b16 %v455
    %v534 = vunpack.c.h.b16 %v455
    %v535 = vunpack.c.l.b16 %v456
    %v536 = vunpack.c.h.b16 %v456
    %v537 = vunpack.c.l.b16 %v457
    %v538 = vunpack.c.h.b16 %v457
    %v539 = vunpack.c.l.b16 %v458
    %v540 = vunpack.c.h.b16 %v458
    %v541 = vunpack.c.l.b16 %v459
    %v542 = vunpack.c.h.b16 %v459
    %v543 = vunpack.c.l.b16 %v460
    %v544 = vunpack.c.h.b16 %v460
    %v545 = vunpack.c.l.b16 %v461
    %v546 = vunpack.c.h.b16 %v461
    %v547 = vunpack.c.l.b16 %v462
    %v548 = vunpack.c.h.b16 %v462
    %v549 = vunpack.c.l.b16 %v463
    %v550 = vunpack.c.h.b16 %v463
    %v551 = vunpack.c.l.b16 %v464
    %v552 = vunpack.c.h.b16 %v464
    %v553 = vunpack.c.l.b16 %v465
    %v554 = vunpack.c.h.b16 %v465
    %v555 = vunpack.c.l.b16 %v466
    %v556 = vunpack.c.h.b16 %v466
    %v557 = vunpack.c.l.b16 %v467
    %v558 = vunpack.c.h.b16 %v467
    %v559 = vunpack.c.l.b16 %v468
    %v560 = vunpack.c.h.b16 %v468
    %v561 = vunpack.c.l.b16 %v469
    %v562 = vunpack.c.h.b16 %v469
    %v563 = vunpack.c.l.b16 %v470
    %v564 = vunpack.c.h.b16 %v470
    %v565 = vunpack.c.l.b16 %v471
    %v566 = vunpack.c.h.b16 %v471
    %v567 = vunpack.c.l.b16 %v472
    %v568 = vunpack.c.h.b16 %v472
    %v569 = vunpack.c.l.b16 %v473
    %v570 = vunpack.c.h.b16 %v473
    %v571 = vunpack.c.l.b16 %v474
    %v572 = vunpack.c.h.b16 %v474
    %v573 = vunpack.c.l.b16 %v475
    %v574 = vunpack.c.h.b16 %v475
    %v575 = vunpack.c.l.b16 %v476
    %v576 = vunpack.c.h.b16 %v476
    %v577 = vunpack.c.l.b16 %v477
    %v578 = vunpack.c.h.b16 %v477
    %v579 = vunpack.c.l.b16 %v478
    %v580 = vunpack.c.h.b16 %v478
    %v581 = vunpack.c.l.b16 %v479
    %v582 = vunpack.c.h.b16 %v479
    %v583 = vpack.c.b16 %v521, %v519
    %v584 = vpack.c.b16 %v522, %v520
    %v585 = vpack.c.b16 %v525, %v523
    %v586 = vpack.c.b16 %v526, %v524
    %v587 = vpack.c.b16 %v529, %v527
    %v588 = vpack.c.b16 %v530, %v528
    %v589 = vpack.c.b16 %v533, %v531
    %v590 = vpack.c.b16 %v534, %v532
    %v591 = vpack.c.b16 %v537, %v535
    %v592 = vpack.c.b16 %v538, %v536
    %v593 = vpack.c.b16 %v541, %v539
    %v594 = vpack.c.b16 %v542, %v540
    %v595 = vpack.c.b16 %v545, %v543
    %v596 = vpack.c.b16 %v546, %v544
    %v597 = vpack.c.b16 %v549, %v547
    %v598 = vpack.c.b16 %v550, %v548
    %v599 = vpack.c.b16 %v553, %v551
    %v600 = vpack.c.b16 %v554, %v552
    %v601 = vpack.c.b16 %v557, %v555
    %v602 = vpack.c.b16 %v558, %v556
    %v603 = vpack.c.b16 %v561, %v559
    %v604 = vpack.c.b16 %v562, %v560
    %v605 = vpack.c.b16 %v565, %v563
    %v606 = vpack.c.b16 %v566, %v564
    %v607 = vpack.c.b16 %v569, %v567
    %v608 = vpack.c.b16 %v570, %v568
    %v609 = vpack.c.b16 %v573, %v571
    %v610 = vpack.c.b16 %v574, %v572
    %v611 = vpack.c.b16 %v577, %v575
    %v612 = vpack.c.b16 %v578, %v576
    %v613 = vpack.c.b16 %v581, %v579
    %v614 = vpack.c.b16 %v582, %v580
    %647 = vmatprep.subr.bf16.mxu0 %v598
    %648 = vmatpush1.bf16.msra.mxu0 %v597
    %649 = vmatprep.subr.bf16.mxu0 %v596
    %650 = vmatpush1.bf16.msra.mxu0 %v595
    %651 = vmatprep.subr.bf16.mxu0 %v594
    %652 = vmatpush1.bf16.msra.mxu0 %v593
    %653 = vmatprep.subr.bf16.mxu0 %v592
    %654 = vmatpush1.bf16.msra.mxu0 %v591
    %655 = vmatprep.subr.bf16.mxu0 %v590
    %656 = vmatpush1.bf16.msra.mxu0 %v589
    %657 = vmatprep.subr.bf16.mxu0 %v588
    %658 = vmatpush1.bf16.msra.mxu0 %v587
    %659 = vmatprep.subr.bf16.mxu0 %v586
    %660 = vmatpush1.bf16.msra.mxu0 %v585
    %661 = vmatprep.subr.bf16.mxu0 %v584
    %662 = vmatpush1.bf16.msra.mxu0 %v583
    %663 = vmatprep.subr.bf16.mxu0 %v614
    %664 = vmatpush2.bf16.msra.mxu0 %v613
    %665 = vmatprep.subr.bf16.mxu0 %v612
    %666 = vmatpush2.bf16.msra.mxu0 %v611
    %667 = vmatprep.subr.bf16.mxu0 %v610
    %668 = vmatpush2.bf16.msra.mxu0 %v609
    %669 = vmatprep.subr.bf16.mxu0 %v608
    %670 = vmatpush2.bf16.msra.mxu0 %v607
    %671 = vmatprep.subr.bf16.mxu0 %v606
    %672 = vmatpush2.bf16.msra.mxu0 %v605
    %673 = vmatprep.subr.bf16.mxu0 %v604
    %674 = vmatpush2.bf16.msra.mxu0 %v603
    %675 = vmatprep.subr.bf16.mxu0 %v602
    %676 = vmatpush2.bf16.msra.mxu0 %v601
    %677 = vmatprep.subr.bf16.mxu0 %v600
    %678 = vmatpush2.bf16.msra.mxu0 %v599
    %679 = vmatprep.mubr.bf16.mxu0 %v486
    %680 = vmatmul.mubr.bf16.gmra.mxu0 %v485
    %v681 = vpop.f32.mrf.mxu0
    %v682 = vadd.f32 0.0, %v681
    %v683 = vpop.f32.mrf.mxu0
    %v684 = vadd.f32 0.0, %v683
    %v685 = vpop.f32.mrf.mxu0
    %v686 = vpop.f32.mrf.mxu0
    %687 = vdwg.mxu0
    %v688 = vadd.f32 %v682, %v257
    %v689 = vtanh.pop %v688
    %v690 = vadd.f32 %v684, %v444
    %v691 = vtanh.pop %v690
    %v692 = vstv %s480
    %vm693 = vcmp.lt.s32.totalorder %v692, %v447
    %v694 = vsel %vm693, 1, 0
    %695 = vset.pattern.permute.xlu0 0
    %696 = vperm.xlu0 %695, %v694
    %v697 = vpop.permute.xlu0 %696
    %vm698 = vcmp.eq.s32.totalorder %v697, 1
    %v699 = vsel %vm698, %v689, %v483
    %s700 = sadd.s32 %s482, 7
    %v701 = vstv %s700
    %vm702 = vcmp.lt.s32.totalorder %v701, %v447
    %v703 = vsel %vm702, 1, 0
    %704 = vset.pattern.permute.xlu0 0
    %705 = vperm.xlu0 %704, %v703
    %v706 = vpop.permute.xlu0 %705
    %vm707 = vcmp.eq.s32.totalorder %v706, 1
    %v708 = vsel %vm707, %v691, %v484
    %v709 = vpack.c.bf16 %v699, %v699
    %v710 = vpack.c.bf16 %v708, %v708
    %711 = vmatprep.subr.bf16.mxu0 %v598
    %712 = vmatpush1.bf16.msra.mxu0 %v597
    %713 = vmatprep.subr.bf16.mxu0 %v596
    %714 = vmatpush1.bf16.msra.mxu0 %v595
    %715 = vmatprep.subr.bf16.mxu0 %v594
    %716 = vmatpush1.bf16.msra.mxu0 %v593
    %717 = vmatprep.subr.bf16.mxu0 %v592
    %718 = vmatpush1.bf16.msra.mxu0 %v591
    %719 = vmatprep.subr.bf16.mxu0 %v590
    %720 = vmatpush1.bf16.msra.mxu0 %v589
    %721 = vmatprep.subr.bf16.mxu0 %v588
    %722 = vmatpush1.bf16.msra.mxu0 %v587
    %723 = vmatprep.subr.bf16.mxu0 %v586
    %724 = vmatpush1.bf16.msra.mxu0 %v585
    %725 = vmatprep.subr.bf16.mxu0 %v584
    %726 = vmatpush1.bf16.msra.mxu0 %v583
    %727 = vmatprep.subr.bf16.mxu0 %v614
    %728 = vmatpush2.bf16.msra.mxu0 %v613
    %729 = vmatprep.subr.bf16.mxu0 %v612
    %730 = vmatpush2.bf16.msra.mxu0 %v611
    %731 = vmatprep.subr.bf16.mxu0 %v610
    %732 = vmatpush2.bf16.msra.mxu0 %v609
    %733 = vmatprep.subr.bf16.mxu0 %v608
    %734 = vmatpush2.bf16.msra.mxu0 %v607
    %735 = vmatprep.subr.bf16.mxu0 %v606
    %736 = vmatpush2.bf16.msra.mxu0 %v605
    %737 = vmatprep.subr.bf16.mxu0 %v604
    %738 = vmatpush2.bf16.msra.mxu0 %v603
    %739 = vmatprep.subr.bf16.mxu0 %v602
    %740 = vmatpush2.bf16.msra.mxu0 %v601
    %741 = vmatprep.subr.bf16.mxu0 %v600
    %742 = vmatpush2.bf16.msra.mxu0 %v599
    %743 = vmatprep.mubr.bf16.mxu0 %v710
    %744 = vmatmul.mubr.bf16.gmra.mxu0 %v709
    %v745 = vpop.f32.mrf.mxu0
    %v746 = vadd.f32 0.0, %v745
    %v747 = vpop.f32.mrf.mxu0
    %v748 = vadd.f32 0.0, %v747
    %v749 = vpop.f32.mrf.mxu0
    %v750 = vpop.f32.mrf.mxu0
    %751 = vdwg.mxu0
    %v752 = vadd.f32 %v746, %v260
    %v753 = vtanh.pop %v752
    %v754 = vadd.f32 %v748, %v441
    %v755 = vtanh.pop %v754
    %s756 = sadd.s32 %s480, 1
    %v757 = vstv %s756
    %vm758 = vcmp.lt.s32.totalorder %v757, %v447
    %v759 = vsel %vm758, 1, 0
    %760 = vset.pattern.permute.xlu0 0
    %761 = vperm.xlu0 %760, %v759
    %v762 = vpop.permute.xlu0 %761
    %vm763 = vcmp.eq.s32.totalorder %v762, 1
    %v764 = vsel %vm763, %v753, %v699
    %s765 = sadd.s32 %s482, 6
    %v766 = vstv %s765
    %vm767 = vcmp.lt.s32.totalorder %v766, %v447
    %v768 = vsel %vm767, 1, 0
    %769 = vset.pattern.permute.xlu0 0
    %770 = vperm.xlu0 %769, %v768
    %v771 = vpop.permute.xlu0 %770
    %vm772 = vcmp.eq.s32.totalorder %v771, 1
    %v773 = vsel %vm772, %v755, %v708
    %v774 = vpack.c.bf16 %v764, %v764
    %v775 = vpack.c.bf16 %v773, %v773
    %776 = vmatprep.subr.bf16.mxu0 %v598
    %777 = vmatpush1.bf16.msra.mxu0 %v597
    %778 = vmatprep.subr.bf16.mxu0 %v596
    %779 = vmatpush1.bf16.msra.mxu0 %v595
    %780 = vmatprep.subr.bf16.mxu0 %v594
    %781 = vmatpush1.bf16.msra.mxu0 %v593
    %782 = vmatprep.subr.bf16.mxu0 %v592
    %783 = vmatpush1.bf16.msra.mxu0 %v591
    %784 = vmatprep.subr.bf16.mxu0 %v590
    %785 = vmatpush1.bf16.msra.mxu0 %v589
    %786 = vmatprep.subr.bf16.mxu0 %v588
    %787 = vmatpush1.bf16.msra.mxu0 %v587
    %788 = vmatprep.subr.bf16.mxu0 %v586
    %789 = vmatpush1.bf16.msra.mxu0 %v585
    %790 = vmatprep.subr.bf16.mxu0 %v584
    %791 = vmatpush1.bf16.msra.mxu0 %v583
    %792 = vmatprep.subr.bf16.mxu0 %v614
    %793 = vmatpush2.bf16.msra.mxu0 %v613
    %794 = vmatprep.subr.bf16.mxu0 %v612
    %795 = vmatpush2.bf16.msra.mxu0 %v611
    %796 = vmatprep.subr.bf16.mxu0 %v610
    %797 = vmatpush2.bf16.msra.mxu0 %v609
    %798 = vmatprep.subr.bf16.mxu0 %v608
    %799 = vmatpush2.bf16.msra.mxu0 %v607
    %800 = vmatprep.subr.bf16.mxu0 %v606
    %801 = vmatpush2.bf16.msra.mxu0 %v605
    %802 = vmatprep.subr.bf16.mxu0 %v604
    %803 = vmatpush2.bf16.msra.mxu0 %v603
    %804 = vmatprep.subr.bf16.mxu0 %v602
    %805 = vmatpush2.bf16.msra.mxu0 %v601
    %806 = vmatprep.subr.bf16.mxu0 %v600
    %807 = vmatpush2.bf16.msra.mxu0 %v599
    %808 = vmatprep.mubr.bf16.mxu0 %v775
    %809 = vmatmul.mubr.bf16.gmra.mxu0 %v774
    %v810 = vpop.f32.mrf.mxu0
    %v811 = vadd.f32 0.0, %v810
    %v812 = vpop.f32.mrf.mxu0
    %v813 = vadd.f32 0.0, %v812
    %v814 = vpop.f32.mrf.mxu0
    %v815 = vpop.f32.mrf.mxu0
    %816 = vdwg.mxu0
    %v817 = vadd.f32 %v811, %v265
    %v818 = vtanh.pop %v817
    %v819 = vadd.f32 %v813, %v436
    %v820 = vtanh.pop %v819
    %s821 = sadd.s32 %s480, 2
    %v822 = vstv %s821
    %vm823 = vcmp.lt.s32.totalorder %v822, %v447
    %v824 = vsel %vm823, 1, 0
    %825 = vset.pattern.permute.xlu0 0
    %826 = vperm.xlu0 %825, %v824
    %v827 = vpop.permute.xlu0 %826
    %vm828 = vcmp.eq.s32.totalorder %v827, 1
    %v829 = vsel %vm828, %v818, %v764
    %s830 = sadd.s32 %s482, 5
    %v831 = vstv %s830
    %vm832 = vcmp.lt.s32.totalorder %v831, %v447
    %v833 = vsel %vm832, 1, 0
    %834 = vset.pattern.permute.xlu0 0
    %835 = vperm.xlu0 %834, %v833
    %v836 = vpop.permute.xlu0 %835
    %vm837 = vcmp.eq.s32.totalorder %v836, 1
    %v838 = vsel %vm837, %v820, %v773
    %v839 = vpack.c.bf16 %v829, %v829
    %v840 = vpack.c.bf16 %v838, %v838
    %841 = vmatprep.subr.bf16.mxu0 %v598
    %842 = vmatpush1.bf16.msra.mxu0 %v597
    %843 = vmatprep.subr.bf16.mxu0 %v596
    %844 = vmatpush1.bf16.msra.mxu0 %v595
    %845 = vmatprep.subr.bf16.mxu0 %v594
    %846 = vmatpush1.bf16.msra.mxu0 %v593
    %847 = vmatprep.subr.bf16.mxu0 %v592
    %848 = vmatpush1.bf16.msra.mxu0 %v591
    %849 = vmatprep.subr.bf16.mxu0 %v590
    %850 = vmatpush1.bf16.msra.mxu0 %v589
    %851 = vmatprep.subr.bf16.mxu0 %v588
    %852 = vmatpush1.bf16.msra.mxu0 %v587
    %853 = vmatprep.subr.bf16.mxu0 %v586
    %854 = vmatpush1.bf16.msra.mxu0 %v585
    %855 = vmatprep.subr.bf16.mxu0 %v584
    %856 = vmatpush1.bf16.msra.mxu0 %v583
    %857 = vmatprep.subr.bf16.mxu0 %v614
    %858 = vmatpush2.bf16.msra.mxu0 %v613
    %859 = vmatprep.subr.bf16.mxu0 %v612
    %860 = vmatpush2.bf16.msra.mxu0 %v611
    %861 = vmatprep.subr.bf16.mxu0 %v610
    %862 = vmatpush2.bf16.msra.mxu0 %v609
    %863 = vmatprep.subr.bf16.mxu0 %v608
    %864 = vmatpush2.bf16.msra.mxu0 %v607
    %865 = vmatprep.subr.bf16.mxu0 %v606
    %866 = vmatpush2.bf16.msra.mxu0 %v605
    %867 = vmatprep.subr.bf16.mxu0 %v604
    %868 = vmatpush2.bf16.msra.mxu0 %v603
    %869 = vmatprep.subr.bf16.mxu0 %v602
    %870 = vmatpush2.bf16.msra.mxu0 %v601
    %871 = vmatprep.subr.bf16.mxu0 %v600
    %872 = vmatpush2.bf16.msra.mxu0 %v599
    %873 = vmatprep.mubr.bf16.mxu0 %v840
    %874 = vmatmul.mubr.bf16.gmra.mxu0 %v839
    %v875 = vpop.f32.mrf.mxu0
    %v876 = vadd.f32 0.0, %v875
    %v877 = vpop.f32.mrf.mxu0
    %v878 = vadd.f32 0.0, %v877
    %v879 = vpop.f32.mrf.mxu0
    %v880 = vpop.f32.mrf.mxu0
    %881 = vdwg.mxu0
    %v882 = vadd.f32 %v876, %v268
    %v883 = vtanh.pop %v882
    %v884 = vadd.f32 %v878, %v433
    %v885 = vtanh.pop %v884
    %s886 = sadd.s32 %s480, 3
    %v887 = vstv %s886
    %vm888 = vcmp.lt.s32.totalorder %v887, %v447
    %v889 = vsel %vm888, 1, 0
    %890 = vset.pattern.permute.xlu0 0
    %891 = vperm.xlu0 %890, %v889
    %v892 = vpop.permute.xlu0 %891
    %vm893 = vcmp.eq.s32.totalorder %v892, 1
    %v894 = vsel %vm893, %v883, %v829
    %s895 = sadd.s32 %s482, 4
    %v896 = vstv %s895
    %vm897 = vcmp.lt.s32.totalorder %v896, %v447
    %v898 = vsel %vm897, 1, 0
    %899 = vset.pattern.permute.xlu0 0
    %900 = vperm.xlu0 %899, %v898
    %v901 = vpop.permute.xlu0 %900
    %vm902 = vcmp.eq.s32.totalorder %v901, 1
    %v903 = vsel %vm902, %v885, %v838
    %v904 = vpack.c.bf16 %v894, %v894
    %v905 = vpack.c.bf16 %v903, %v903
    %906 = vmatprep.subr.bf16.mxu0 %v598
    %907 = vmatpush1.bf16.msra.mxu0 %v597
    %908 = vmatprep.subr.bf16.mxu0 %v596
    %909 = vmatpush1.bf16.msra.mxu0 %v595
    %910 = vmatprep.subr.bf16.mxu0 %v594
    %911 = vmatpush1.bf16.msra.mxu0 %v593
    %912 = vmatprep.subr.bf16.mxu0 %v592
    %913 = vmatpush1.bf16.msra.mxu0 %v591
    %914 = vmatprep.subr.bf16.mxu0 %v590
    %915 = vmatpush1.bf16.msra.mxu0 %v589
    %916 = vmatprep.subr.bf16.mxu0 %v588
    %917 = vmatpush1.bf16.msra.mxu0 %v587
    %918 = vmatprep.subr.bf16.mxu0 %v586
    %919 = vmatpush1.bf16.msra.mxu0 %v585
    %920 = vmatprep.subr.bf16.mxu0 %v584
    %921 = vmatpush1.bf16.msra.mxu0 %v583
    %922 = vmatprep.subr.bf16.mxu0 %v614
    %923 = vmatpush2.bf16.msra.mxu0 %v613
    %924 = vmatprep.subr.bf16.mxu0 %v612
    %925 = vmatpush2.bf16.msra.mxu0 %v611
    %926 = vmatprep.subr.bf16.mxu0 %v610
    %927 = vmatpush2.bf16.msra.mxu0 %v609
    %928 = vmatprep.subr.bf16.mxu0 %v608
    %929 = vmatpush2.bf16.msra.mxu0 %v607
    %930 = vmatprep.subr.bf16.mxu0 %v606
    %931 = vmatpush2.bf16.msra.mxu0 %v605
    %932 = vmatprep.subr.bf16.mxu0 %v604
    %933 = vmatpush2.bf16.msra.mxu0 %v603
    %934 = vmatprep.subr.bf16.mxu0 %v602
    %935 = vmatpush2.bf16.msra.mxu0 %v601
    %936 = vmatprep.subr.bf16.mxu0 %v600
    %937 = vmatpush2.bf16.msra.mxu0 %v599
    %938 = vmatprep.mubr.bf16.mxu0 %v905
    %939 = vmatmul.mubr.bf16.gmra.mxu0 %v904
    %v940 = vpop.f32.mrf.mxu0
    %v941 = vadd.f32 0.0, %v940
    %v942 = vpop.f32.mrf.mxu0
    %v943 = vadd.f32 0.0, %v942
    %v944 = vpop.f32.mrf.mxu0
    %v945 = vpop.f32.mrf.mxu0
    %946 = vdwg.mxu0
    %v947 = vadd.f32 %v941, %v273
    %v948 = vtanh.pop %v947
    %v949 = vadd.f32 %v943, %v428
    %v950 = vtanh.pop %v949
    %s951 = sadd.s32 %s480, 4
    %v952 = vstv %s951
    %vm953 = vcmp.lt.s32.totalorder %v952, %v447
    %v954 = vsel %vm953, 1, 0
    %955 = vset.pattern.permute.xlu0 0
    %956 = vperm.xlu0 %955, %v954
    %v957 = vpop.permute.xlu0 %956
    %vm958 = vcmp.eq.s32.totalorder %v957, 1
    %v959 = vsel %vm958, %v948, %v894
    %s960 = sadd.s32 %s482, 3
    %v961 = vstv %s960
    %vm962 = vcmp.lt.s32.totalorder %v961, %v447
    %v963 = vsel %vm962, 1, 0
    %964 = vset.pattern.permute.xlu0 0
    %965 = vperm.xlu0 %964, %v963
    %v966 = vpop.permute.xlu0 %965
    %vm967 = vcmp.eq.s32.totalorder %v966, 1
    %v968 = vsel %vm967, %v950, %v903
    %v969 = vpack.c.bf16 %v959, %v959
    %v970 = vpack.c.bf16 %v968, %v968
    %971 = vmatprep.subr.bf16.mxu0 %v598
    %972 = vmatpush1.bf16.msra.mxu0 %v597
    %973 = vmatprep.subr.bf16.mxu0 %v596
    %974 = vmatpush1.bf16.msra.mxu0 %v595
    %975 = vmatprep.subr.bf16.mxu0 %v594
    %976 = vmatpush1.bf16.msra.mxu0 %v593
    %977 = vmatprep.subr.bf16.mxu0 %v592
    %978 = vmatpush1.bf16.msra.mxu0 %v591
    %979 = vmatprep.subr.bf16.mxu0 %v590
    %980 = vmatpush1.bf16.msra.mxu0 %v589
    %981 = vmatprep.subr.bf16.mxu0 %v588
    %982 = vmatpush1.bf16.msra.mxu0 %v587
    %983 = vmatprep.subr.bf16.mxu0 %v586
    %984 = vmatpush1.bf16.msra.mxu0 %v585
    %985 = vmatprep.subr.bf16.mxu0 %v584
    %986 = vmatpush1.bf16.msra.mxu0 %v583
    %987 = vmatprep.subr.bf16.mxu0 %v614
    %988 = vmatpush2.bf16.msra.mxu0 %v613
    %989 = vmatprep.subr.bf16.mxu0 %v612
    %990 = vmatpush2.bf16.msra.mxu0 %v611
    %991 = vmatprep.subr.bf16.mxu0 %v610
    %992 = vmatpush2.bf16.msra.mxu0 %v609
    %993 = vmatprep.subr.bf16.mxu0 %v608
    %994 = vmatpush2.bf16.msra.mxu0 %v607
    %995 = vmatprep.subr.bf16.mxu0 %v606
    %996 = vmatpush2.bf16.msra.mxu0 %v605
    %997 = vmatprep.subr.bf16.mxu0 %v604
    %998 = vmatpush2.bf16.msra.mxu0 %v603
    %999 = vmatprep.subr.bf16.mxu0 %v602
    %1000 = vmatpush2.bf16.msra.mxu0 %v601
    %1001 = vmatprep.subr.bf16.mxu0 %v600
    %1002 = vmatpush2.bf16.msra.mxu0 %v599
    %1003 = vmatprep.mubr.bf16.mxu0 %v970
    %1004 = vmatmul.mubr.bf16.gmra.mxu0 %v969
    %v1005 = vpop.f32.mrf.mxu0
    %v1006 = vadd.f32 0.0, %v1005
    %v1007 = vpop.f32.mrf.mxu0
    %v1008 = vadd.f32 0.0, %v1007
    %v1009 = vpop.f32.mrf.mxu0
    %v1010 = vpop.f32.mrf.mxu0
    %1011 = vdwg.mxu0
    %v1012 = vadd.f32 %v1006, %v276
    %v1013 = vtanh.pop %v1012
    %v1014 = vadd.f32 %v1008, %v425
    %v1015 = vtanh.pop %v1014
    %s1016 = sadd.s32 %s480, 5
    %v1017 = vstv %s1016
    %vm1018 = vcmp.lt.s32.totalorder %v1017, %v447
    %v1019 = vsel %vm1018, 1, 0
    %1020 = vset.pattern.permute.xlu0 0
    %1021 = vperm.xlu0 %1020, %v1019
    %v1022 = vpop.permute.xlu0 %1021
    %vm1023 = vcmp.eq.s32.totalorder %v1022, 1
    %v1024 = vsel %vm1023, %v1013, %v959
    %s1025 = sadd.s32 %s482, 2
    %v1026 = vstv %s1025
    %vm1027 = vcmp.lt.s32.totalorder %v1026, %v447
    %v1028 = vsel %vm1027, 1, 0
    %1029 = vset.pattern.permute.xlu0 0
    %1030 = vperm.xlu0 %1029, %v1028
    %v1031 = vpop.permute.xlu0 %1030
    %vm1032 = vcmp.eq.s32.totalorder %v1031, 1
    %v1033 = vsel %vm1032, %v1015, %v968
    %v1034 = vpack.c.bf16 %v1024, %v1024
    %v1035 = vpack.c.bf16 %v1033, %v1033
    %1036 = vmatprep.subr.bf16.mxu0 %v598
    %1037 = vmatpush1.bf16.msra.mxu0 %v597
    %1038 = vmatprep.subr.bf16.mxu0 %v596
    %1039 = vmatpush1.bf16.msra.mxu0 %v595
    %1040 = vmatprep.subr.bf16.mxu0 %v594
    %1041 = vmatpush1.bf16.msra.mxu0 %v593
    %1042 = vmatprep.subr.bf16.mxu0 %v592
    %1043 = vmatpush1.bf16.msra.mxu0 %v591
    %1044 = vmatprep.subr.bf16.mxu0 %v590
    %1045 = vmatpush1.bf16.msra.mxu0 %v589
    %1046 = vmatprep.subr.bf16.mxu0 %v588
    %1047 = vmatpush1.bf16.msra.mxu0 %v587
    %1048 = vmatprep.subr.bf16.mxu0 %v586
    %1049 = vmatpush1.bf16.msra.mxu0 %v585
    %1050 = vmatprep.subr.bf16.mxu0 %v584
    %1051 = vmatpush1.bf16.msra.mxu0 %v583
    %1052 = vmatprep.subr.bf16.mxu0 %v614
    %1053 = vmatpush2.bf16.msra.mxu0 %v613
    %1054 = vmatprep.subr.bf16.mxu0 %v612
    %1055 = vmatpush2.bf16.msra.mxu0 %v611
    %1056 = vmatprep.subr.bf16.mxu0 %v610
    %1057 = vmatpush2.bf16.msra.mxu0 %v609
    %1058 = vmatprep.subr.bf16.mxu0 %v608
    %1059 = vmatpush2.bf16.msra.mxu0 %v607
    %1060 = vmatprep.subr.bf16.mxu0 %v606
    %1061 = vmatpush2.bf16.msra.mxu0 %v605
    %1062 = vmatprep.subr.bf16.mxu0 %v604
    %1063 = vmatpush2.bf16.msra.mxu0 %v603
    %1064 = vmatprep.subr.bf16.mxu0 %v602
    %1065 = vmatpush2.bf16.msra.mxu0 %v601
    %1066 = vmatprep.subr.bf16.mxu0 %v600
    %1067 = vmatpush2.bf16.msra.mxu0 %v599
    %1068 = vmatprep.mubr.bf16.mxu0 %v1035
    %1069 = vmatmul.mubr.bf16.gmra.mxu0 %v1034
    %v1070 = vpop.f32.mrf.mxu0
    %v1071 = vadd.f32 0.0, %v1070
    %v1072 = vpop.f32.mrf.mxu0
    %v1073 = vadd.f32 0.0, %v1072
    %v1074 = vpop.f32.mrf.mxu0
    %v1075 = vpop.f32.mrf.mxu0
    %1076 = vdwg.mxu0
    %v1077 = vadd.f32 %v1071, %v281
    %v1078 = vtanh.pop %v1077
    %v1079 = vadd.f32 %v1073, %v420
    %v1080 = vtanh.pop %v1079
    %s1081 = sadd.s32 %s480, 6
    %v1082 = vstv %s1081
    %vm1083 = vcmp.lt.s32.totalorder %v1082, %v447
    %v1084 = vsel %vm1083, 1, 0
    %1085 = vset.pattern.permute.xlu0 0
    %1086 = vperm.xlu0 %1085, %v1084
    %v1087 = vpop.permute.xlu0 %1086
    %vm1088 = vcmp.eq.s32.totalorder %v1087, 1
    %v1089 = vsel %vm1088, %v1078, %v1024
    %s1090 = sadd.s32 %s482, 1
    %v1091 = vstv %s1090
    %vm1092 = vcmp.lt.s32.totalorder %v1091, %v447
    %v1093 = vsel %vm1092, 1, 0
    %1094 = vset.pattern.permute.xlu0 0
    %1095 = vperm.xlu0 %1094, %v1093
    %v1096 = vpop.permute.xlu0 %1095
    %vm1097 = vcmp.eq.s32.totalorder %v1096, 1
    %v1098 = vsel %vm1097, %v1080, %v1033
    %v1099 = vpack.c.bf16 %v1089, %v1089
    %v1100 = vpack.c.bf16 %v1098, %v1098
    %1101 = vmatprep.subr.bf16.mxu0 %v598
    %1102 = vmatpush1.bf16.msra.mxu0 %v597
    %1103 = vmatprep.subr.bf16.mxu0 %v596
    %1104 = vmatpush1.bf16.msra.mxu0 %v595
    %1105 = vmatprep.subr.bf16.mxu0 %v594
    %1106 = vmatpush1.bf16.msra.mxu0 %v593
    %1107 = vmatprep.subr.bf16.mxu0 %v592
    %1108 = vmatpush1.bf16.msra.mxu0 %v591
    %1109 = vmatprep.subr.bf16.mxu0 %v590
    %1110 = vmatpush1.bf16.msra.mxu0 %v589
    %1111 = vmatprep.subr.bf16.mxu0 %v588
    %1112 = vmatpush1.bf16.msra.mxu0 %v587
    %1113 = vmatprep.subr.bf16.mxu0 %v586
    %1114 = vmatpush1.bf16.msra.mxu0 %v585
    %1115 = vmatprep.subr.bf16.mxu0 %v584
    %1116 = vmatpush1.bf16.msra.mxu0 %v583
    %1117 = vmatprep.subr.bf16.mxu0 %v614
    %1118 = vmatpush2.bf16.msra.mxu0 %v613
    %1119 = vmatprep.subr.bf16.mxu0 %v612
    %1120 = vmatpush2.bf16.msra.mxu0 %v611
    %1121 = vmatprep.subr.bf16.mxu0 %v610
    %1122 = vmatpush2.bf16.msra.mxu0 %v609
    %1123 = vmatprep.subr.bf16.mxu0 %v608
    %1124 = vmatpush2.bf16.msra.mxu0 %v607
    %1125 = vmatprep.subr.bf16.mxu0 %v606
    %1126 = vmatpush2.bf16.msra.mxu0 %v605
    %1127 = vmatprep.subr.bf16.mxu0 %v604
    %1128 = vmatpush2.bf16.msra.mxu0 %v603
    %1129 = vmatprep.subr.bf16.mxu0 %v602
    %1130 = vmatpush2.bf16.msra.mxu0 %v601
    %1131 = vmatprep.subr.bf16.mxu0 %v600
    %1132 = vmatpush2.bf16.msra.mxu0 %v599
    %1133 = vmatprep.mubr.bf16.mxu0 %v1100
    %1134 = vmatmul.mubr.bf16.gmra.mxu0 %v1099
    %v1135 = vpop.f32.mrf.mxu0
    %v1136 = vadd.f32 0.0, %v1135
    %v1137 = vpop.f32.mrf.mxu0
    %v1138 = vadd.f32 0.0, %v1137
    %v1139 = vpop.f32.mrf.mxu0
    %v1140 = vpop.f32.mrf.mxu0
    %1141 = vdwg.mxu0
    %v1142 = vadd.f32 %v1136, %v284
    %v1143 = vtanh.pop %v1142
    %v1144 = vadd.f32 %v1138, %v417
    %v1145 = vtanh.pop %v1144
    %s1146 = sadd.s32 %s480, 7
    %v1147 = vstv %s1146
    %vm1148 = vcmp.lt.s32.totalorder %v1147, %v447
    %v1149 = vsel %vm1148, 1, 0
    %1150 = vset.pattern.permute.xlu0 0
    %1151 = vperm.xlu0 %1150, %v1149
    %v1152 = vpop.permute.xlu0 %1151
    %vm1153 = vcmp.eq.s32.totalorder %v1152, 1
    %v1154 = vsel %vm1153, %v1143, %v1089
    %v1155 = vstv %s482
    %vm1156 = vcmp.lt.s32.totalorder %v1155, %v447
    %v1157 = vsel %vm1156, 1, 0
    %1158 = vset.pattern.permute.xlu0 0
    %1159 = vperm.xlu0 %1158, %v1157
    %v1160 = vpop.permute.xlu0 %1159
    %vm1161 = vcmp.eq.s32.totalorder %v1160, 1
    %v1162 = vsel %vm1161, %v1145, %v1098
    %1163 = vst [vmem:[#allocation11] sm:$0xff] %v1154
    %1164 = vst [vmem:[#allocation11 + $0x8] sm:$0xff] %v1162
    // Predicated region
    $region58: #{tpu_custom_call.1} parent=1 // pred_check
      _
    $region59: #{tpu_custom_call.1} parent=1 // pred_check_branch
      %1166 = sbr.rel (0) target = $region61
    $region60: #{tpu_custom_call.1} parent=1 // pred_region
      %s1168 = ssub.s32 256, 256
      %1169 = vsyncadd [#allocation4], %s1168
      %s1171 = sshll.u32 [#allocation11], 4
      %s1172 = int_to_ptr.vmem [resolvable:$true] %s1171
      %1174 = dma.vmem_to_hbm [thread:$0]  %s1172, 256, %s8, [#allocation4]
    $region61: #{tpu_custom_call.1} parent=1 // pred_fallthru
      _
    // Predicated region
    $region62: #{tpu_custom_call.1} parent=1 // pred_check
      _
    $region63: #{tpu_custom_call.1} parent=1 // pred_check_branch
      %1176 = sbr.rel (0) target = $region65
    $region64: #{tpu_custom_call.1} parent=1 // pred_region
      %1177 = dma.done [#allocation4], 256
    $region65: #{tpu_custom_call.1} parent=1 // pred_fallthru
      _
    %1178 = vsyncpa [#allocation3], 1
    %1179 = vsyncpa [#allocation6], 1
    %1180 = vsyncpa [#allocation9], 1
    %1181 = vsyncpa [#allocation4], 1

</llo_original>
